<compile_context>
chip_gen: v7x
topology: tpu7x:2x2x1
jax: 0.10.0
libtpu: 0.0.40
codegen_flags: <defaults>
</compile_context>

<pallas_src>
import functools

import jax
import jax.numpy as jnp
from jax import lax
from jax.experimental import pallas as pl
from jax.experimental.pallas import tpu as pltpu

NUM_ATOM = 8                       # N nodes per system (= edge-attribute columns)
D_NODE = 32                        # node latent feature dim
HIDDEN = 64                        # hidden dim of node_ode_func_net MLP
D_TOTAL = D_NODE + NUM_ATOM        # 40


def _node_grad(node, edge, w1, b1, w2, b2):
    """grad_node = tanh((edge @ node) @ W1 + b1) @ W2 + b2, reassociated as
    edge @ (node @ W1).  node: [TB, N, D_NODE], edge: [TB, N, N], f32."""
    tb = node.shape[0]
    rows = tb * NUM_ATOM

    # Dominant FLOPs as one big MXU matmul (M = tb*N, K = 32, N = 64).
    nw1 = jnp.dot(node.reshape(rows, D_NODE), w1,
                  preferred_element_type=jnp.float32)
    nw1 = nw1.reshape(tb, NUM_ATOM, HIDDEN)

    # Batched K=8 contraction on the VPU (unrolled broadcast-mul + accumulate):
    #   msg[b, i, :] = sum_j edge[b, i, j] * nw1[b, j, :]
    msg = edge[:, :, 0:1] * nw1[:, 0:1, :]
    for j in range(1, NUM_ATOM):
        msg = msg + edge[:, :, j:j + 1] * nw1[:, j:j + 1, :]

    h = jnp.tanh(msg.reshape(rows, HIDDEN) + b1)
    gn = jnp.dot(h, w2, preferred_element_type=jnp.float32) + b2
    return gn.reshape(tb, NUM_ATOM, D_NODE)


# ------------------------------ single ODE step ------------------------------

def _forward_kernel(z_ref, w1_ref, b_ref, w2_ref, out_ref):
    z = z_ref[...].astype(jnp.float32)
    node = z[..., :D_NODE]                 # z[:, :-num_atom]
    edge = z[..., D_NODE:]                 # z[:, -num_atom:]  == grad_edge
    b = b_ref[...].astype(jnp.float32)

    gn = _node_grad(node, edge,
                    w1_ref[...].astype(jnp.float32), b[:, :HIDDEN],
                    w2_ref[...].astype(jnp.float32), b[:, HIDDEN:])

    # grad = cat([grad_node, grad_edge], -1); nn.Dropout is identity in eval.
    # TODO(synk): training-mode stochastic dropout mask not reproduced.
    out_ref[...] = jnp.concatenate([gn, edge], axis=-1).astype(out_ref.dtype)


def _pick_tb(batch, block_b):
    """Largest divisor of `batch` not exceeding block_b.  Big tiles amortise the
    ~0.35 us per-grid-step overhead; the default cap keeps the double-buffered
    in/out tiles plus loop intermediates well inside the default scoped VMEM
    limit on v5e/v6e/v7x.  On v7x keep >= 2 tiles so both TensorCores get work
    via the "parallel" batch axis."""
    tb = max(1, min(block_b, batch))
    while batch % tb:
        tb -= 1
    return tb


def coupled_ode_func(t_local, z, w1, b1, w2, b2, *, block_b=512):
    """One ODE step for a batch of systems.  z: [B, N, D_TOTAL] -> dz/dt."""
    del t_local  # unused by the reference forward
    B, N, D = z.shape
    assert N == NUM_ATOM and D == D_TOTAL
    tb = _pick_tb(B, block_b)

    b_packed = jnp.concatenate([b1, b2], axis=1)              # [1, HIDDEN + D_NODE]

    return pl.pallas_call(
        _forward_kernel,
        out_shape=jax.ShapeDtypeStruct((B, N, D), z.dtype),
        grid=(B // tb,),
        in_specs=[
            pl.BlockSpec((tb, N, D), lambda i: (i, 0, 0)),
            pl.BlockSpec((D_NODE, HIDDEN), lambda i: (0, 0)),          # resident
            pl.BlockSpec((1, HIDDEN + D_NODE), lambda i: (0, 0)),      # resident
            pl.BlockSpec((HIDDEN, D_NODE), lambda i: (0, 0)),          # resident
        ],
        out_specs=pl.BlockSpec((tb, N, D), lambda i: (i, 0, 0)),
        compiler_params=pltpu.CompilerParams(dimension_semantics=("parallel",)),
    )(z, w1, b_packed, w2)


# -------------------------- fused Euler integration ---------------------------

def _euler_kernel(z_ref, w1_ref, b_ref, w2_ref, out_ref, *, dt, num_steps):
    z = z_ref[...].astype(jnp.float32)
    node0 = z[..., :D_NODE]
    edge0 = z[..., D_NODE:]
    tb = node0.shape[0]
    rows = tb * NUM_ATOM

    w1 = w1_ref[...].astype(jnp.float32)
    w2 = w2_ref[...].astype(jnp.float32)
    b = b_ref[...].astype(jnp.float32)
    # Hoist bias broadcasts out of the time loop (JAX does not CSE them).
    b1 = jnp.broadcast_to(b[:, :HIDDEN], (rows, HIDDEN))
    b2 = jnp.broadcast_to(b[:, HIDDEN:], (rows, D_NODE))

    dt_f = jnp.float32(dt)
    one_plus_dt = jnp.float32(1.0 + dt)

    def body(node, edge):
        gn = _node_grad(node, edge, w1, b1, w2, b2)
        # grad_edge == edge, so the edge update is a plain scalar multiply.
        return node + dt_f * gn, edge * one_plus_dt

    if num_steps <= 16:
        # Short fixed trip count: fully unroll so the scheduler sees everything.
        node, edge = node0, edge0
        for _ in range(num_steps):
            node, edge = body(node, edge)
    else:
        node, edge = lax.fori_loop(
            0, num_steps, lambda _, c: body(*c), (node0, edge0))

    # Single 40-lane concat + store, only at the very end.
    out_ref[...] = jnp.concatenate([node, edge], axis=-1).astype(out_ref.dtype)


def coupled_ode_euler(z, w1, b1, w2, b2, *, num_steps, dt, block_b=512):
    """Explicit-Euler integration of the coupled ODE in ONE pallas_call; the
    time loop runs entirely inside the kernel (no time grid axis), weights stay
    resident in VMEM, and state lives in registers/VMEM as loop carries."""
    B, N, D = z.shape
    assert N == NUM_ATOM and D == D_TOTAL
    tb = _pick_tb(B, block_b)

    b_packed = jnp.concatenate([b1, b2], axis=1)
    kernel = functools.partial(_euler_kernel, dt=float(dt),
                               num_steps=int(num_steps))

    return pl.pallas_call(
        kernel,
        out_shape=jax.ShapeDtypeStruct((B, N, D), z.dtype),
        grid=(B // tb,),                    # batch axis only; time loop is in-kernel
        in_specs=[
            pl.BlockSpec((tb, N, D), lambda i: (i, 0, 0)),
            pl.BlockSpec((D_NODE, HIDDEN), lambda i: (0, 0)),
            pl.BlockSpec((1, HIDDEN + D_NODE), lambda i: (0, 0)),
            pl.BlockSpec((HIDDEN, D_NODE), lambda i: (0, 0)),
        ],
        out_specs=pl.BlockSpec((tb, N, D), lambda i: (i, 0, 0)),
        input_output_aliases={0: 0},        # state output reuses the z buffer
        compiler_params=pltpu.CompilerParams(dimension_semantics=("parallel",)),
    )(z, w1, b_packed, w2)


# ----------------------------- pure-JAX references ---------------------------

def _reference_grad(z, w1, b1, w2, b2):
    node = z[..., :D_NODE]
    edge = z[..., D_NODE:]
    msg = jnp.einsum("bij,bjd->bid", edge, node)
    grad_node = jnp.tanh(msg @ w1 + b1) @ w2 + b2
    return jnp.concatenate([grad_node, edge], axis=-1)


def _reference_euler(z, w1, b1, w2, b2, num_steps, dt):
    for _ in range(num_steps):
        z = z + dt * _reference_grad(z, w1, b1, w2, b2)
    return z


if __name__ == "__main__":
    key = jax.random.PRNGKey(0)
    k_z, k_w1, k_b1, k_w2, k_b2 = jax.random.split(key, 5)

    B = 32   # independent systems batched along the leading axis
    z = jax.random.normal(k_z, (B, NUM_ATOM, D_TOTAL), dtype=jnp.float32)

    # deterministic parameters for node_ode_func_net (synthetic init)
    w1 = 0.1 * jax.random.normal(k_w1, (D_NODE, HIDDEN), dtype=jnp.float32)
    b1 = 0.1 * jax.random.normal(k_b1, (1, HIDDEN), dtype=jnp.float32)
    w2 = 0.1 * jax.random.normal(k_w2, (HIDDEN, D_NODE), dtype=jnp.float32)
    b2 = 0.1 * jax.random.normal(k_b2, (1, D_NODE), dtype=jnp.float32)

    T, dt = 8, 0.05
    ref_grad = _reference_grad(z, w1, b1, w2, b2)
    ref_T = _reference_euler(z, w1, b1, w2, b2, T, dt)

    # --- single forward pass (the module's forward: dz/dt) -------------------
    t_local = jnp.float32(0.0)
    grad = jax.block_until_ready(coupled_ode_func(t_local, z, w1, b1, w2, b2))
    assert grad.shape == z.shape and grad.dtype == z.dtype
    assert jnp.allclose(grad, ref_grad, atol=1e-4, rtol=1e-4)

    # --- fused Euler integration: all ODE steps in ONE pallas_call -----------
    euler_fn = jax.jit(functools.partial(coupled_ode_euler, num_steps=T, dt=dt))
    z_T = jax.block_until_ready(euler_fn(z, w1, b1, w2, b2))
    assert z_T.shape == z.shape and z_T.dtype == z.dtype
    assert jnp.allclose(z_T, ref_T, atol=1e-3, rtol=1e-3)

    print("KERNEL_OK")
</pallas_src>

<mosaic_0001>
module attributes {stable_mosaic.version = 11 : i64} {
  func.func @_forward_kernel(%arg0: i32, %arg1: memref<32x8x40xf32, #tpu.memory_space<vmem>>, %arg2: memref<32x64xf32, #tpu.memory_space<vmem>>, %arg3: memref<1x96xf32, #tpu.memory_space<vmem>>, %arg4: memref<64x32xf32, #tpu.memory_space<vmem>>, %arg5: memref<32x8x40xf32, #tpu.memory_space<vmem>>) attributes {dimension_semantics = [#tpu.dimension_semantics<parallel>], iteration_bounds = array<i64: 1>, scalar_prefetch = 0 : i64, scratch_operands = 0 : i64, tpu.core_type = #tpu.core_type<tc>, window_params = [{transform_indices = @transform_0, window_bounds = array<i64: 32, 8, 40>}, {pipeline_mode = #tpu.pipeline_mode<synchronous>, transform_indices = @transform_1, window_bounds = array<i64: 32, 64>}, {pipeline_mode = #tpu.pipeline_mode<synchronous>, transform_indices = @transform_2, window_bounds = array<i64: 1, 96>}, {pipeline_mode = #tpu.pipeline_mode<synchronous>, transform_indices = @transform_3, window_bounds = array<i64: 64, 32>}, {transform_indices = @transform_4, window_bounds = array<i64: 32, 8, 40>}]} {
    %c0 = arith.constant 0 : index
    %c0_0 = arith.constant 0 : index
    %c0_1 = arith.constant 0 : index
    %0 = vector.load %arg1[%c0, %c0_0, %c0_1] : memref<32x8x40xf32, #tpu.memory_space<vmem>>, vector<32x8x40xf32>
    %1 = vector.extract_strided_slice %0 {offsets = [0, 0, 0], sizes = [32, 8, 32], strides = [1, 1, 1]} : vector<32x8x40xf32> to vector<32x8x32xf32>
    %2 = vector.extract_strided_slice %0 {offsets = [0, 0, 32], sizes = [32, 8, 8], strides = [1, 1, 1]} : vector<32x8x40xf32> to vector<32x8x8xf32>
    %c0_2 = arith.constant 0 : index
    %c0_3 = arith.constant 0 : index
    %3 = vector.load %arg3[%c0_2, %c0_3] : memref<1x96xf32, #tpu.memory_space<vmem>>, vector<1x96xf32>
    %c0_4 = arith.constant 0 : index
    %c0_5 = arith.constant 0 : index
    %4 = vector.load %arg2[%c0_4, %c0_5] : memref<32x64xf32, #tpu.memory_space<vmem>>, vector<32x64xf32>
    %5 = vector.extract_strided_slice %3 {offsets = [0, 0], sizes = [1, 64], strides = [1, 1]} : vector<1x96xf32> to vector<1x64xf32>
    %c0_6 = arith.constant 0 : index
    %c0_7 = arith.constant 0 : index
    %6 = vector.load %arg4[%c0_6, %c0_7] : memref<64x32xf32, #tpu.memory_space<vmem>>, vector<64x32xf32>
    %7 = vector.extract_strided_slice %3 {offsets = [0, 64], sizes = [1, 32], strides = [1, 1]} : vector<1x96xf32> to vector<1x32xf32>
    %8 = vector.shape_cast %1 : vector<32x8x32xf32> to vector<256x32xf32>
    %cst = arith.constant dense<0.000000e+00> : vector<256x64xf32>
    %9 = tpu.matmul %8, %4, %cst {dimension_numbers = #tpu.dot_dimension_numbers<[1], [0], [0], [1], [0, 0, 1, 1], [], []>} : vector<256x32xf32>, vector<32x64xf32>, vector<256x64xf32> -> vector<256x64xf32>
    %10 = vector.shape_cast %9 : vector<256x64xf32> to vector<32x8x64xf32>
    %11 = vector.extract_strided_slice %2 {offsets = [0, 0, 0], sizes = [32, 8, 1], strides = [1, 1, 1]} : vector<32x8x8xf32> to vector<32x8x1xf32>
    %12 = vector.extract_strided_slice %10 {offsets = [0, 0, 0], sizes = [32, 1, 64], strides = [1, 1, 1]} : vector<32x8x64xf32> to vector<32x1x64xf32>
    %13 = vector.broadcast %11 : vector<32x8x1xf32> to vector<32x8x64xf32>
    %14 = vector.broadcast %12 : vector<32x1x64xf32> to vector<32x8x64xf32>
    %15 = arith.mulf %13, %14 : vector<32x8x64xf32>
    %16 = vector.extract_strided_slice %2 {offsets = [0, 0, 1], sizes = [32, 8, 1], strides = [1, 1, 1]} : vector<32x8x8xf32> to vector<32x8x1xf32>
    %17 = vector.extract_strided_slice %10 {offsets = [0, 1, 0], sizes = [32, 1, 64], strides = [1, 1, 1]} : vector<32x8x64xf32> to vector<32x1x64xf32>
    %18 = vector.broadcast %16 : vector<32x8x1xf32> to vector<32x8x64xf32>
    %19 = vector.broadcast %17 : vector<32x1x64xf32> to vector<32x8x64xf32>
    %20 = arith.mulf %18, %19 : vector<32x8x64xf32>
    %21 = arith.addf %15, %20 : vector<32x8x64xf32>
    %22 = vector.extract_strided_slice %2 {offsets = [0, 0, 2], sizes = [32, 8, 1], strides = [1, 1, 1]} : vector<32x8x8xf32> to vector<32x8x1xf32>
    %23 = vector.extract_strided_slice %10 {offsets = [0, 2, 0], sizes = [32, 1, 64], strides = [1, 1, 1]} : vector<32x8x64xf32> to vector<32x1x64xf32>
    %24 = vector.broadcast %22 : vector<32x8x1xf32> to vector<32x8x64xf32>
    %25 = vector.broadcast %23 : vector<32x1x64xf32> to vector<32x8x64xf32>
    %26 = arith.mulf %24, %25 : vector<32x8x64xf32>
    %27 = arith.addf %21, %26 : vector<32x8x64xf32>
    %28 = vector.extract_strided_slice %2 {offsets = [0, 0, 3], sizes = [32, 8, 1], strides = [1, 1, 1]} : vector<32x8x8xf32> to vector<32x8x1xf32>
    %29 = vector.extract_strided_slice %10 {offsets = [0, 3, 0], sizes = [32, 1, 64], strides = [1, 1, 1]} : vector<32x8x64xf32> to vector<32x1x64xf32>
    %30 = vector.broadcast %28 : vector<32x8x1xf32> to vector<32x8x64xf32>
    %31 = vector.broadcast %29 : vector<32x1x64xf32> to vector<32x8x64xf32>
    %32 = arith.mulf %30, %31 : vector<32x8x64xf32>
    %33 = arith.addf %27, %32 : vector<32x8x64xf32>
    %34 = vector.extract_strided_slice %2 {offsets = [0, 0, 4], sizes = [32, 8, 1], strides = [1, 1, 1]} : vector<32x8x8xf32> to vector<32x8x1xf32>
    %35 = vector.extract_strided_slice %10 {offsets = [0, 4, 0], sizes = [32, 1, 64], strides = [1, 1, 1]} : vector<32x8x64xf32> to vector<32x1x64xf32>
    %36 = vector.broadcast %34 : vector<32x8x1xf32> to vector<32x8x64xf32>
    %37 = vector.broadcast %35 : vector<32x1x64xf32> to vector<32x8x64xf32>
    %38 = arith.mulf %36, %37 : vector<32x8x64xf32>
    %39 = arith.addf %33, %38 : vector<32x8x64xf32>
    %40 = vector.extract_strided_slice %2 {offsets = [0, 0, 5], sizes = [32, 8, 1], strides = [1, 1, 1]} : vector<32x8x8xf32> to vector<32x8x1xf32>
    %41 = vector.extract_strided_slice %10 {offsets = [0, 5, 0], sizes = [32, 1, 64], strides = [1, 1, 1]} : vector<32x8x64xf32> to vector<32x1x64xf32>
    %42 = vector.broadcast %40 : vector<32x8x1xf32> to vector<32x8x64xf32>
    %43 = vector.broadcast %41 : vector<32x1x64xf32> to vector<32x8x64xf32>
    %44 = arith.mulf %42, %43 : vector<32x8x64xf32>
    %45 = arith.addf %39, %44 : vector<32x8x64xf32>
    %46 = vector.extract_strided_slice %2 {offsets = [0, 0, 6], sizes = [32, 8, 1], strides = [1, 1, 1]} : vector<32x8x8xf32> to vector<32x8x1xf32>
    %47 = vector.extract_strided_slice %10 {offsets = [0, 6, 0], sizes = [32, 1, 64], strides = [1, 1, 1]} : vector<32x8x64xf32> to vector<32x1x64xf32>
    %48 = vector.broadcast %46 : vector<32x8x1xf32> to vector<32x8x64xf32>
    %49 = vector.broadcast %47 : vector<32x1x64xf32> to vector<32x8x64xf32>
    %50 = arith.mulf %48, %49 : vector<32x8x64xf32>
    %51 = arith.addf %45, %50 : vector<32x8x64xf32>
    %52 = vector.extract_strided_slice %2 {offsets = [0, 0, 7], sizes = [32, 8, 1], strides = [1, 1, 1]} : vector<32x8x8xf32> to vector<32x8x1xf32>
    %53 = vector.extract_strided_slice %10 {offsets = [0, 7, 0], sizes = [32, 1, 64], strides = [1, 1, 1]} : vector<32x8x64xf32> to vector<32x1x64xf32>
    %54 = vector.broadcast %52 : vector<32x8x1xf32> to vector<32x8x64xf32>
    %55 = vector.broadcast %53 : vector<32x1x64xf32> to vector<32x8x64xf32>
    %56 = arith.mulf %54, %55 : vector<32x8x64xf32>
    %57 = arith.addf %51, %56 : vector<32x8x64xf32>
    %58 = vector.shape_cast %57 : vector<32x8x64xf32> to vector<256x64xf32>
    %59 = vector.broadcast %5 : vector<1x64xf32> to vector<256x64xf32>
    %60 = arith.addf %58, %59 : vector<256x64xf32>
    %61 = math.tanh %60 : vector<256x64xf32>
    %cst_8 = arith.constant dense<0.000000e+00> : vector<256x32xf32>
    %62 = tpu.matmul %61, %6, %cst_8 {dimension_numbers = #tpu.dot_dimension_numbers<[1], [0], [0], [1], [0, 0, 1, 1], [], []>} : vector<256x64xf32>, vector<64x32xf32>, vector<256x32xf32> -> vector<256x32xf32>
    %63 = vector.broadcast %7 : vector<1x32xf32> to vector<256x32xf32>
    %64 = arith.addf %62, %63 : vector<256x32xf32>
    %65 = vector.shape_cast %64 : vector<256x32xf32> to vector<32x8x32xf32>
    %66 = tpu.concatenate %65, %2 in 2 : vector<32x8x32xf32>, vector<32x8x8xf32> -> vector<32x8x40xf32>
    %c0_9 = arith.constant 0 : index
    %c0_10 = arith.constant 0 : index
    %c0_11 = arith.constant 0 : index
    %67 = vector.load %arg5[%c0_9, %c0_10, %c0_11] : memref<32x8x40xf32, #tpu.memory_space<vmem>>, vector<32x8x40xf32>
    tpu.vector_store %arg5[%c0_9, %c0_10, %c0_11], %66 {strides = array<i32>} : memref<32x8x40xf32, #tpu.memory_space<vmem>>, vector<32x8x40xf32>,
    return
  }
  func.func @transform_0(%arg0: i32) -> (i32, i32, i32) {
    %c0_i32 = arith.constant 0 : i32
    %c0_i32_0 = arith.constant 0 : i32
    %c0_i32_1 = arith.constant 0 : i32
    return %arg0, %c0_i32, %c0_i32_0 : i32, i32, i32
  }
  func.func @transform_1(%arg0: i32) -> (i32, i32) {
    %c0_i32 = arith.constant 0 : i32
    %c0_i32_0 = arith.constant 0 : i32
    %c0_i32_1 = arith.constant 0 : i32
    return %c0_i32, %c0_i32_0 : i32, i32
  }
  func.func @transform_2(%arg0: i32) -> (i32, i32) {
    %c0_i32 = arith.constant 0 : i32
    %c0_i32_0 = arith.constant 0 : i32
    %c0_i32_1 = arith.constant 0 : i32
    return %c0_i32, %c0_i32_0 : i32, i32
  }
  func.func @transform_3(%arg0: i32) -> (i32, i32) {
    %c0_i32 = arith.constant 0 : i32
    %c0_i32_0 = arith.constant 0 : i32
    %c0_i32_1 = arith.constant 0 : i32
    return %c0_i32, %c0_i32_0 : i32, i32
  }
  func.func @transform_4(%arg0: i32) -> (i32, i32, i32) {
    %c0_i32 = arith.constant 0 : i32
    %c0_i32_0 = arith.constant 0 : i32
    %c0_i32_1 = arith.constant 0 : i32
    return %arg0, %c0_i32, %c0_i32_0 : i32, i32, i32
  }
}

</mosaic_0001>

<llo_original>
// kernel: tpu_custom_call.1
$region0: #{tpu_custom_call.1}
  #allocation0 [shape = 'u32[]', space=smem, size = 0x4, offset = 0x4, fixed_abs, tag = 'smem constant byte address 0x4 - core index']
  #allocation1 [shape = 'u32[144,128]{1,0:T(1,128)}', space=vmem, size = 0x12000, scoped, tag = 'internal scratch']
  %s0 = inlined_call_operand.hbm [shape: f32[32,8,40], index: 0, kind: input, shape index: {}]
  %s1 = inlined_call_operand.vmem [shape: f32[32,64], index: 1, kind: input, shape index: {}]
  %s2 = inlined_call_operand.vmem [shape: f32[1,96], index: 2, kind: input, shape index: {}]
  %s3 = inlined_call_operand.vmem [shape: f32[64,32], index: 3, kind: input, shape index: {}]
  %s4 = inlined_call_operand.hbm [shape: f32[32,8,40], index: 4, kind: output, shape index: {}]
  %s5 = sld [smem:[#allocation0]]
  $region30: #{tpu_custom_call.1} parent=0
    _
  %s7 = ssub.s32 1, %s5
  %s8 = scalar_select 0, %s7, %s5
  $region1: #{tpu_custom_call.1} parent=0
    #allocation2 [shape = 'u8[131072]{0}', space=vmem, size = 0x20000, scoped, tag = 'input window, operand 0, single buffered']
    #allocation3 [shape = 's32[1]{0}', space=sflag, size = 0x4, scoped, tag = 'scoped memory for tpu_custom_call.1']
    #allocation4 [shape = 's32[1]{0}', space=sflag, size = 0x4, scoped, tag = 'scoped memory for tpu_custom_call.1']
    #allocation5 [shape = 'u8[131072]{0}', space=vmem, size = 0x20000, scoped, tag = 'output window, operand 0, single buffered']
    %9 = vsyncpa [#allocation3], 0
    %10 = vsyncpa [#allocation4], 0
    // Predicated region
    $region2: #{tpu_custom_call.1} parent=1 // pred_check
      _
    $region3: #{tpu_custom_call.1} parent=1 // pred_check_branch
      %12 = sbr.rel (0) target = $region5
    $region4: #{tpu_custom_call.1} parent=1 // pred_region
      %s14 = ssub.s32 4096, 4096
      %15 = vsyncadd [#allocation3], %s14
      %s16 = sshll.u32 [#allocation2], 4
      %s17 = int_to_ptr.vmem [resolvable:$true] %s16
      %22 = dma.hbm_to_vmem [thread:$0]  %s0, 4096, %s17, [#allocation3], 128, 128, 8
    $region5: #{tpu_custom_call.1} parent=1 // pred_fallthru
      _
    // Predicated region
    $region6: #{tpu_custom_call.1} parent=1 // pred_check
      _
    $region7: #{tpu_custom_call.1} parent=1 // pred_check_branch
      %24 = sbr.rel (0) target = $region9
    $region8: #{tpu_custom_call.1} parent=1 // pred_region
      _
    $region9: #{tpu_custom_call.1} parent=1 // pred_fallthru
      _
    // Predicated region
    $region10: #{tpu_custom_call.1} parent=1 // pred_check
      _
    $region11: #{tpu_custom_call.1} parent=1 // pred_check_branch
      %26 = sbr.rel (0) target = $region13
    $region12: #{tpu_custom_call.1} parent=1 // pred_region
      _
    $region13: #{tpu_custom_call.1} parent=1 // pred_fallthru
      _
    // Predicated region
    $region14: #{tpu_custom_call.1} parent=1 // pred_check
      _
    $region15: #{tpu_custom_call.1} parent=1 // pred_check_branch
      %28 = sbr.rel (0) target = $region17
    $region16: #{tpu_custom_call.1} parent=1 // pred_region
      _
    $region17: #{tpu_custom_call.1} parent=1 // pred_fallthru
      _
    // Predicated region
    $region18: #{tpu_custom_call.1} parent=1 // pred_check
      _
    $region19: #{tpu_custom_call.1} parent=1 // pred_check_branch
      %30 = sbr.rel (0) target = $region21
    $region20: #{tpu_custom_call.1} parent=1 // pred_region
      %31 = dma.done [#allocation3], 4096
    $region21: #{tpu_custom_call.1} parent=1 // pred_fallthru
      _
    %v32 = vld [vmem:[#allocation2] sm:$0xff]
    %v33 = vld [vmem:[#allocation2 + $0x8] sm:$0xff]
    %v34 = vld [vmem:[#allocation2 + $0x10] sm:$0xff]
    %v35 = vld [vmem:[#allocation2 + $0x18] sm:$0xff]
    %v36 = vld [vmem:[#allocation2 + $0x20] sm:$0xff]
    %v37 = vld [vmem:[#allocation2 + $0x28] sm:$0xff]
    %v38 = vld [vmem:[#allocation2 + $0x30] sm:$0xff]
    %v39 = vld [vmem:[#allocation2 + $0x38] sm:$0xff]
    %v40 = vld [vmem:[#allocation2 + $0x40] sm:$0xff]
    %v41 = vld [vmem:[#allocation2 + $0x48] sm:$0xff]
    %v42 = vld [vmem:[#allocation2 + $0x50] sm:$0xff]
    %v43 = vld [vmem:[#allocation2 + $0x58] sm:$0xff]
    %v44 = vld [vmem:[#allocation2 + $0x60] sm:$0xff]
    %v45 = vld [vmem:[#allocation2 + $0x68] sm:$0xff]
    %v46 = vld [vmem:[#allocation2 + $0x70] sm:$0xff]
    %v47 = vld [vmem:[#allocation2 + $0x78] sm:$0xff]
    %v48 = vld [vmem:[#allocation2 + $0x80] sm:$0xff]
    %v49 = vld [vmem:[#allocation2 + $0x88] sm:$0xff]
    %v50 = vld [vmem:[#allocation2 + $0x90] sm:$0xff]
    %v51 = vld [vmem:[#allocation2 + $0x98] sm:$0xff]
    %v52 = vld [vmem:[#allocation2 + $0xa0] sm:$0xff]
    %v53 = vld [vmem:[#allocation2 + $0xa8] sm:$0xff]
    %v54 = vld [vmem:[#allocation2 + $0xb0] sm:$0xff]
    %v55 = vld [vmem:[#allocation2 + $0xb8] sm:$0xff]
    %v56 = vld [vmem:[#allocation2 + $0xc0] sm:$0xff]
    %v57 = vld [vmem:[#allocation2 + $0xc8] sm:$0xff]
    %v58 = vld [vmem:[#allocation2 + $0xd0] sm:$0xff]
    %v59 = vld [vmem:[#allocation2 + $0xd8] sm:$0xff]
    %v60 = vld [vmem:[#allocation2 + $0xe0] sm:$0xff]
    %v61 = vld [vmem:[#allocation2 + $0xe8] sm:$0xff]
    %v62 = vld [vmem:[#allocation2 + $0xf0] sm:$0xff]
    %v63 = vld [vmem:[#allocation2 + $0xf8] sm:$0xff]
    %v64 = vld [vmem:[%s2] sm:$0x1]
    %v65 = vld [vmem:[%s1] sm:$0xff]
    %v66 = vld [vmem:[%s1 + $0x8] sm:$0xff]
    %v67 = vld [vmem:[%s1 + $0x10] sm:$0xff]
    %v68 = vld [vmem:[%s1 + $0x18] sm:$0xff]
    %v69 = vld [vmem:[%s3] sm:$0xff]
    %v70 = vld [vmem:[%s3 + $0x8] sm:$0xff]
    %v71 = vld [vmem:[%s3 + $0x10] sm:$0xff]
    %v72 = vld [vmem:[%s3 + $0x18] sm:$0xff]
    %v73 = vld [vmem:[%s3 + $0x20] sm:$0xff]
    %v74 = vld [vmem:[%s3 + $0x28] sm:$0xff]
    %v75 = vld [vmem:[%s3 + $0x30] sm:$0xff]
    %v76 = vld [vmem:[%s3 + $0x38] sm:$0xff]
    %vm77 = vcmask 261120
    %v79 = vsel %vm77, %v32, 0
    %v82 = vsel %vm77, %v33, 0
    %v85 = vsel %vm77, %v34, 0
    %v88 = vsel %vm77, %v35, 0
    %v91 = vsel %vm77, %v36, 0
    %v94 = vsel %vm77, %v37, 0
    %v97 = vsel %vm77, %v38, 0
    %v100 = vsel %vm77, %v39, 0
    %v103 = vsel %vm77, %v40, 0
    %v106 = vsel %vm77, %v41, 0
    %v109 = vsel %vm77, %v42, 0
    %v112 = vsel %vm77, %v43, 0
    %v115 = vsel %vm77, %v44, 0
    %v118 = vsel %vm77, %v45, 0
    %v121 = vsel %vm77, %v46, 0
    %v124 = vsel %vm77, %v47, 0
    %v127 = vsel %vm77, %v48, 0
    %v130 = vsel %vm77, %v49, 0
    %v133 = vsel %vm77, %v50, 0
    %v136 = vsel %vm77, %v51, 0
    %v139 = vsel %vm77, %v52, 0
    %v142 = vsel %vm77, %v53, 0
    %v145 = vsel %vm77, %v54, 0
    %v148 = vsel %vm77, %v55, 0
    %v151 = vsel %vm77, %v56, 0
    %v154 = vsel %vm77, %v57, 0
    %v157 = vsel %vm77, %v58, 0
    %v160 = vsel %vm77, %v59, 0
    %v163 = vsel %vm77, %v60, 0
    %v166 = vsel %vm77, %v61, 0
    %v169 = vsel %vm77, %v62, 0
    %v172 = vsel %vm77, %v63, 0
    %174 = vmatprep.subr.mxu0 0.0
    %175 = vmatpush1.msra.mxu0 %v65
    %176 = vmatprep.subr.mxu0 0.0
    %177 = vmatpush1.msra.mxu0 %v66
    %178 = vmatprep.subr.mxu0 0.0
    %179 = vmatpush1.msra.mxu0 %v67
    %180 = vmatprep.subr.mxu0 0.0
    %181 = vmatpush1.msra.mxu0 %v68
    %182 = vmatprep.subr.mxu0 0.0
    %183 = vmatpush1.msra.mxu0 0.0
    %184 = vmatprep.subr.mxu0 0.0
    %185 = vmatpush1.msra.mxu0 0.0
    %186 = vmatprep.subr.mxu0 0.0
    %187 = vmatpush1.msra.mxu0 0.0
    %188 = vmatprep.subr.mxu0 0.0
    %189 = vmatpush1.msra.mxu0 0.0
    %190 = vmatprep.subr.mxu0 0.0
    %191 = vmatpush1.msra.mxu0 0.0
    %192 = vmatprep.subr.mxu0 0.0
    %193 = vmatpush1.msra.mxu0 0.0
    %194 = vmatprep.subr.mxu0 0.0
    %195 = vmatpush1.msra.mxu0 0.0
    %196 = vmatprep.subr.mxu0 0.0
    %197 = vmatpush1.msra.mxu0 0.0
    %198 = vmatprep.subr.mxu0 0.0
    %199 = vmatpush1.msra.mxu0 0.0
    %200 = vmatprep.subr.mxu0 0.0
    %201 = vmatpush1.msra.mxu0 0.0
    %202 = vmatprep.subr.mxu0 0.0
    %203 = vmatpush1.msra.mxu0 0.0
    %204 = vmatprep.subr.mxu0 0.0
    %205 = vmatpush1.msra.mxu0 0.0
    %206 = vmatprep.subr.mxu0 0.0
    %207 = vmatpush1.msra.mxu0 0.0
    %208 = vmatprep.subr.mxu0 0.0
    %209 = vmatpush1.msra.mxu0 0.0
    %210 = vmatprep.subr.mxu0 0.0
    %211 = vmatpush1.msra.mxu0 0.0
    %212 = vmatprep.subr.mxu0 0.0
    %213 = vmatpush1.msra.mxu0 0.0
    %214 = vmatprep.subr.mxu0 0.0
    %215 = vmatpush1.msra.mxu0 0.0
    %216 = vmatprep.subr.mxu0 0.0
    %217 = vmatpush1.msra.mxu0 0.0
    %218 = vmatprep.subr.mxu0 0.0
    %219 = vmatpush1.msra.mxu0 0.0
    %220 = vmatprep.subr.mxu0 0.0
    %221 = vmatpush1.msra.mxu0 0.0
    %222 = vmatprep.subr.mxu0 0.0
    %223 = vmatpush1.msra.mxu0 0.0
    %224 = vmatprep.subr.mxu0 0.0
    %225 = vmatpush1.msra.mxu0 0.0
    %226 = vmatprep.subr.mxu0 0.0
    %227 = vmatpush1.msra.mxu0 0.0
    %228 = vmatprep.subr.mxu0 0.0
    %229 = vmatpush1.msra.mxu0 0.0
    %230 = vmatprep.subr.mxu0 0.0
    %231 = vmatpush1.msra.mxu0 0.0
    %232 = vmatprep.subr.mxu0 0.0
    %233 = vmatpush1.msra.mxu0 0.0
    %234 = vmatprep.subr.mxu0 0.0
    %235 = vmatpush1.msra.mxu0 0.0
    %236 = vmatprep.subr.mxu0 0.0
    %237 = vmatpush1.msra.mxu0 0.0
    %238 = vmatprep.mubr.f32.mxu0 0.0
    %239 = vmatmul.mubr.f32.gmra.mrb[0].mxu0 %v79
    %v240 = vpop.f32.mrb[0].mxu0
    %v241 = vadd.f32 0.0, %v240
    %v242 = vpop.f32.mrb[0].mxu0
    %243 = vmatprep.mubr.f32.mxu0 0.0
    %244 = vmatmul.mubr.f32.gmra.mrb[0].mxu0 %v82
    %v245 = vpop.f32.mrb[0].mxu0
    %v246 = vadd.f32 0.0, %v245
    %v247 = vpop.f32.mrb[0].mxu0
    %248 = vmatprep.mubr.f32.mxu0 0.0
    %249 = vmatmul.mubr.f32.gmra.mrb[0].mxu0 %v85
    %v250 = vpop.f32.mrb[0].mxu0
    %v251 = vadd.f32 0.0, %v250
    %v252 = vpop.f32.mrb[0].mxu0
    %253 = vmatprep.mubr.f32.mxu0 0.0
    %254 = vmatmul.mubr.f32.gmra.mrb[0].mxu0 %v88
    %v255 = vpop.f32.mrb[0].mxu0
    %v256 = vadd.f32 0.0, %v255
    %v257 = vpop.f32.mrb[0].mxu0
    %258 = vmatprep.mubr.f32.mxu0 0.0
    %259 = vmatmul.mubr.f32.gmra.mrb[0].mxu0 %v91
    %v260 = vpop.f32.mrb[0].mxu0
    %v261 = vadd.f32 0.0, %v260
    %v262 = vpop.f32.mrb[0].mxu0
    %263 = vmatprep.mubr.f32.mxu0 0.0
    %264 = vmatmul.mubr.f32.gmra.mrb[0].mxu0 %v94
    %v265 = vpop.f32.mrb[0].mxu0
    %v266 = vadd.f32 0.0, %v265
    %v267 = vpop.f32.mrb[0].mxu0
    %268 = vmatprep.mubr.f32.mxu0 0.0
    %269 = vmatmul.mubr.f32.gmra.mrb[0].mxu0 %v97
    %v270 = vpop.f32.mrb[0].mxu0
    %v271 = vadd.f32 0.0, %v270
    %v272 = vpop.f32.mrb[0].mxu0
    %273 = vmatprep.mubr.f32.mxu0 0.0
    %274 = vmatmul.mubr.f32.gmra.mrb[0].mxu0 %v100
    %v275 = vpop.f32.mrb[0].mxu0
    %v276 = vadd.f32 0.0, %v275
    %v277 = vpop.f32.mrb[0].mxu0
    %278 = vmatprep.mubr.f32.mxu0 0.0
    %279 = vmatmul.mubr.f32.gmra.mrb[0].mxu0 %v103
    %v280 = vpop.f32.mrb[0].mxu0
    %v281 = vadd.f32 0.0, %v280
    %v282 = vpop.f32.mrb[0].mxu0
    %283 = vmatprep.mubr.f32.mxu0 0.0
    %284 = vmatmul.mubr.f32.gmra.mrb[0].mxu0 %v106
    %v285 = vpop.f32.mrb[0].mxu0
    %v286 = vadd.f32 0.0, %v285
    %v287 = vpop.f32.mrb[0].mxu0
    %288 = vmatprep.mubr.f32.mxu0 0.0
    %289 = vmatmul.mubr.f32.gmra.mrb[0].mxu0 %v109
    %v290 = vpop.f32.mrb[0].mxu0
    %v291 = vadd.f32 0.0, %v290
    %v292 = vpop.f32.mrb[0].mxu0
    %293 = vmatprep.mubr.f32.mxu0 0.0
    %294 = vmatmul.mubr.f32.gmra.mrb[0].mxu0 %v112
    %v295 = vpop.f32.mrb[0].mxu0
    %v296 = vadd.f32 0.0, %v295
    %v297 = vpop.f32.mrb[0].mxu0
    %298 = vmatprep.mubr.f32.mxu0 0.0
    %299 = vmatmul.mubr.f32.gmra.mrb[0].mxu0 %v115
    %v300 = vpop.f32.mrb[0].mxu0
    %v301 = vadd.f32 0.0, %v300
    %v302 = vpop.f32.mrb[0].mxu0
    %303 = vmatprep.mubr.f32.mxu0 0.0
    %304 = vmatmul.mubr.f32.gmra.mrb[0].mxu0 %v118
    %v305 = vpop.f32.mrb[0].mxu0
    %v306 = vadd.f32 0.0, %v305
    %v307 = vpop.f32.mrb[0].mxu0
    %308 = vmatprep.mubr.f32.mxu0 0.0
    %309 = vmatmul.mubr.f32.gmra.mrb[0].mxu0 %v121
    %v310 = vpop.f32.mrb[0].mxu0
    %v311 = vadd.f32 0.0, %v310
    %v312 = vpop.f32.mrb[0].mxu0
    %313 = vmatprep.mubr.f32.mxu0 0.0
    %314 = vmatmul.mubr.f32.gmra.mrb[0].mxu0 %v124
    %v315 = vpop.f32.mrb[0].mxu0
    %v316 = vadd.f32 0.0, %v315
    %v317 = vpop.f32.mrb[0].mxu0
    %318 = vmatprep.mubr.f32.mxu0 0.0
    %319 = vmatmul.mubr.f32.gmra.mrb[0].mxu0 %v127
    %v320 = vpop.f32.mrb[0].mxu0
    %v321 = vadd.f32 0.0, %v320
    %v322 = vpop.f32.mrb[0].mxu0
    %323 = vmatprep.mubr.f32.mxu0 0.0
    %324 = vmatmul.mubr.f32.gmra.mrb[0].mxu0 %v130
    %v325 = vpop.f32.mrb[0].mxu0
    %v326 = vadd.f32 0.0, %v325
    %v327 = vpop.f32.mrb[0].mxu0
    %328 = vmatprep.mubr.f32.mxu0 0.0
    %329 = vmatmul.mubr.f32.gmra.mrb[0].mxu0 %v133
    %v330 = vpop.f32.mrb[0].mxu0
    %v331 = vadd.f32 0.0, %v330
    %v332 = vpop.f32.mrb[0].mxu0
    %333 = vmatprep.mubr.f32.mxu0 0.0
    %334 = vmatmul.mubr.f32.gmra.mrb[0].mxu0 %v136
    %v335 = vpop.f32.mrb[0].mxu0
    %v336 = vadd.f32 0.0, %v335
    %v337 = vpop.f32.mrb[0].mxu0
    %338 = vmatprep.mubr.f32.mxu0 0.0
    %339 = vmatmul.mubr.f32.gmra.mrb[0].mxu0 %v139
    %v340 = vpop.f32.mrb[0].mxu0
    %v341 = vadd.f32 0.0, %v340
    %v342 = vpop.f32.mrb[0].mxu0
    %343 = vmatprep.mubr.f32.mxu0 0.0
    %344 = vmatmul.mubr.f32.gmra.mrb[0].mxu0 %v142
    %v345 = vpop.f32.mrb[0].mxu0
    %v346 = vadd.f32 0.0, %v345
    %v347 = vpop.f32.mrb[0].mxu0
    %348 = vmatprep.mubr.f32.mxu0 0.0
    %349 = vmatmul.mubr.f32.gmra.mrb[0].mxu0 %v145
    %v350 = vpop.f32.mrb[0].mxu0
    %v351 = vadd.f32 0.0, %v350
    %v352 = vpop.f32.mrb[0].mxu0
    %353 = vmatprep.mubr.f32.mxu0 0.0
    %354 = vmatmul.mubr.f32.gmra.mrb[0].mxu0 %v148
    %v355 = vpop.f32.mrb[0].mxu0
    %v356 = vadd.f32 0.0, %v355
    %v357 = vpop.f32.mrb[0].mxu0
    %358 = vmatprep.mubr.f32.mxu0 0.0
    %359 = vmatmul.mubr.f32.gmra.mrb[0].mxu0 %v151
    %v360 = vpop.f32.mrb[0].mxu0
    %v361 = vadd.f32 0.0, %v360
    %v362 = vpop.f32.mrb[0].mxu0
    %363 = vmatprep.mubr.f32.mxu0 0.0
    %364 = vmatmul.mubr.f32.gmra.mrb[0].mxu0 %v154
    %v365 = vpop.f32.mrb[0].mxu0
    %v366 = vadd.f32 0.0, %v365
    %v367 = vpop.f32.mrb[0].mxu0
    %368 = vmatprep.mubr.f32.mxu0 0.0
    %369 = vmatmul.mubr.f32.gmra.mrb[0].mxu0 %v157
    %v370 = vpop.f32.mrb[0].mxu0
    %v371 = vadd.f32 0.0, %v370
    %v372 = vpop.f32.mrb[0].mxu0
    %373 = vmatprep.mubr.f32.mxu0 0.0
    %374 = vmatmul.mubr.f32.gmra.mrb[0].mxu0 %v160
    %v375 = vpop.f32.mrb[0].mxu0
    %v376 = vadd.f32 0.0, %v375
    %v377 = vpop.f32.mrb[0].mxu0
    %378 = vmatprep.mubr.f32.mxu0 0.0
    %379 = vmatmul.mubr.f32.gmra.mrb[0].mxu0 %v163
    %v380 = vpop.f32.mrb[0].mxu0
    %v381 = vadd.f32 0.0, %v380
    %v382 = vpop.f32.mrb[0].mxu0
    %383 = vmatprep.mubr.f32.mxu0 0.0
    %384 = vmatmul.mubr.f32.gmra.mrb[0].mxu0 %v166
    %v385 = vpop.f32.mrb[0].mxu0
    %v386 = vadd.f32 0.0, %v385
    %v387 = vpop.f32.mrb[0].mxu0
    %388 = vmatprep.mubr.f32.mxu0 0.0
    %389 = vmatmul.mubr.f32.gmra.mrb[0].mxu0 %v169
    %v390 = vpop.f32.mrb[0].mxu0
    %v391 = vadd.f32 0.0, %v390
    %v392 = vpop.f32.mrb[0].mxu0
    %393 = vmatprep.mubr.f32.mxu0 0.0
    %394 = vmatmul.mubr.f32.gmra.mrb[0].mxu0 %v172
    %v395 = vpop.f32.mrb[0].mxu0
    %v396 = vadd.f32 0.0, %v395
    %v397 = vpop.f32.mrb[0].mxu0
    %398 = vdwg.mxu0
    %399 = vset.pattern.permute.xlu0 32
    %400 = vperm.xlu0 %399, %v32
    %v401 = vpop.permute.xlu0 %400
    %403 = vset.pattern.permute.xlu0 32
    %404 = vperm.xlu0 %403, %v33
    %v405 = vpop.permute.xlu0 %404
    %407 = vset.pattern.permute.xlu0 32
    %408 = vperm.xlu0 %407, %v34
    %v409 = vpop.permute.xlu0 %408
    %411 = vset.pattern.permute.xlu0 32
    %412 = vperm.xlu0 %411, %v35
    %v413 = vpop.permute.xlu0 %412
    %415 = vset.pattern.permute.xlu0 32
    %416 = vperm.xlu0 %415, %v36
    %v417 = vpop.permute.xlu0 %416
    %419 = vset.pattern.permute.xlu0 32
    %420 = vperm.xlu0 %419, %v37
    %v421 = vpop.permute.xlu0 %420
    %423 = vset.pattern.permute.xlu0 32
    %424 = vperm.xlu0 %423, %v38
    %v425 = vpop.permute.xlu0 %424
    %427 = vset.pattern.permute.xlu0 32
    %428 = vperm.xlu0 %427, %v39
    %v429 = vpop.permute.xlu0 %428
    %431 = vset.pattern.permute.xlu0 32
    %432 = vperm.xlu0 %431, %v40
    %v433 = vpop.permute.xlu0 %432
    %435 = vset.pattern.permute.xlu0 32
    %436 = vperm.xlu0 %435, %v41
    %v437 = vpop.permute.xlu0 %436
    %439 = vset.pattern.permute.xlu0 32
    %440 = vperm.xlu0 %439, %v42
    %v441 = vpop.permute.xlu0 %440
    %443 = vset.pattern.permute.xlu0 32
    %444 = vperm.xlu0 %443, %v43
    %v445 = vpop.permute.xlu0 %444
    %447 = vset.pattern.permute.xlu0 32
    %448 = vperm.xlu0 %447, %v44
    %v449 = vpop.permute.xlu0 %448
    %451 = vset.pattern.permute.xlu0 32
    %452 = vperm.xlu0 %451, %v45
    %v453 = vpop.permute.xlu0 %452
    %455 = vset.pattern.permute.xlu0 32
    %456 = vperm.xlu0 %455, %v46
    %v457 = vpop.permute.xlu0 %456
    %459 = vset.pattern.permute.xlu0 32
    %460 = vperm.xlu0 %459, %v47
    %v461 = vpop.permute.xlu0 %460
    %463 = vset.pattern.permute.xlu0 32
    %464 = vperm.xlu0 %463, %v48
    %v465 = vpop.permute.xlu0 %464
    %467 = vset.pattern.permute.xlu0 32
    %468 = vperm.xlu0 %467, %v49
    %v469 = vpop.permute.xlu0 %468
    %471 = vset.pattern.permute.xlu0 32
    %472 = vperm.xlu0 %471, %v50
    %v473 = vpop.permute.xlu0 %472
    %475 = vset.pattern.permute.xlu0 32
    %476 = vperm.xlu0 %475, %v51
    %v477 = vpop.permute.xlu0 %476
    %479 = vset.pattern.permute.xlu0 32
    %480 = vperm.xlu0 %479, %v52
    %v481 = vpop.permute.xlu0 %480
    %483 = vset.pattern.permute.xlu0 32
    %484 = vperm.xlu0 %483, %v53
    %v485 = vpop.permute.xlu0 %484
    %487 = vset.pattern.permute.xlu0 32
    %488 = vperm.xlu0 %487, %v54
    %v489 = vpop.permute.xlu0 %488
    %491 = vset.pattern.permute.xlu0 32
    %492 = vperm.xlu0 %491, %v55
    %v493 = vpop.permute.xlu0 %492
    %495 = vset.pattern.permute.xlu0 32
    %496 = vperm.xlu0 %495, %v56
    %v497 = vpop.permute.xlu0 %496
    %499 = vset.pattern.permute.xlu0 32
    %500 = vperm.xlu0 %499, %v57
    %v501 = vpop.permute.xlu0 %500
    %503 = vset.pattern.permute.xlu0 32
    %504 = vperm.xlu0 %503, %v58
    %v505 = vpop.permute.xlu0 %504
    %507 = vset.pattern.permute.xlu0 32
    %508 = vperm.xlu0 %507, %v59
    %v509 = vpop.permute.xlu0 %508
    %511 = vset.pattern.permute.xlu0 32
    %512 = vperm.xlu0 %511, %v60
    %v513 = vpop.permute.xlu0 %512
    %515 = vset.pattern.permute.xlu0 32
    %516 = vperm.xlu0 %515, %v61
    %v517 = vpop.permute.xlu0 %516
    %519 = vset.pattern.permute.xlu0 32
    %520 = vperm.xlu0 %519, %v62
    %v521 = vpop.permute.xlu0 %520
    %523 = vset.pattern.permute.xlu0 32
    %524 = vperm.xlu0 %523, %v63
    %v525 = vpop.permute.xlu0 %524
    %v527 = vlaneseq
    %v528 = vshrl.u32 %v527, 7
    %v529 = vsub.s32 0, %v528
    %v530 = vrot.slane %v241, %v529
    %v531 = vlaneseq
    %v532 = vshrl.u32 %v531, 7
    %v533 = vsub.s32 0, %v532
    %v534 = vrot.slane %v246, %v533
    %v535 = vlaneseq
    %v536 = vshrl.u32 %v535, 7
    %v537 = vsub.s32 0, %v536
    %v538 = vrot.slane %v251, %v537
    %v539 = vlaneseq
    %v540 = vshrl.u32 %v539, 7
    %v541 = vsub.s32 0, %v540
    %v542 = vrot.slane %v256, %v541
    %v543 = vlaneseq
    %v544 = vshrl.u32 %v543, 7
    %v545 = vsub.s32 0, %v544
    %v546 = vrot.slane %v261, %v545
    %v547 = vlaneseq
    %v548 = vshrl.u32 %v547, 7
    %v549 = vsub.s32 0, %v548
    %v550 = vrot.slane %v266, %v549
    %v551 = vlaneseq
    %v552 = vshrl.u32 %v551, 7
    %v553 = vsub.s32 0, %v552
    %v554 = vrot.slane %v271, %v553
    %v555 = vlaneseq
    %v556 = vshrl.u32 %v555, 7
    %v557 = vsub.s32 0, %v556
    %v558 = vrot.slane %v276, %v557
    %v559 = vlaneseq
    %v560 = vshrl.u32 %v559, 7
    %v561 = vsub.s32 0, %v560
    %v562 = vrot.slane %v281, %v561
    %v563 = vlaneseq
    %v564 = vshrl.u32 %v563, 7
    %v565 = vsub.s32 0, %v564
    %v566 = vrot.slane %v286, %v565
    %v567 = vlaneseq
    %v568 = vshrl.u32 %v567, 7
    %v569 = vsub.s32 0, %v568
    %v570 = vrot.slane %v291, %v569
    %v571 = vlaneseq
    %v572 = vshrl.u32 %v571, 7
    %v573 = vsub.s32 0, %v572
    %v574 = vrot.slane %v296, %v573
    %v575 = vlaneseq
    %v576 = vshrl.u32 %v575, 7
    %v577 = vsub.s32 0, %v576
    %v578 = vrot.slane %v301, %v577
    %v579 = vlaneseq
    %v580 = vshrl.u32 %v579, 7
    %v581 = vsub.s32 0, %v580
    %v582 = vrot.slane %v306, %v581
    %v583 = vlaneseq
    %v584 = vshrl.u32 %v583, 7
    %v585 = vsub.s32 0, %v584
    %v586 = vrot.slane %v311, %v585
    %v587 = vlaneseq
    %v588 = vshrl.u32 %v587, 7
    %v589 = vsub.s32 0, %v588
    %v590 = vrot.slane %v316, %v589
    %v591 = vlaneseq
    %v592 = vshrl.u32 %v591, 7
    %v593 = vsub.s32 0, %v592
    %v594 = vrot.slane %v321, %v593
    %v595 = vlaneseq
    %v596 = vshrl.u32 %v595, 7
    %v597 = vsub.s32 0, %v596
    %v598 = vrot.slane %v326, %v597
    %v599 = vlaneseq
    %v600 = vshrl.u32 %v599, 7
    %v601 = vsub.s32 0, %v600
    %v602 = vrot.slane %v331, %v601
    %v603 = vlaneseq
    %v604 = vshrl.u32 %v603, 7
    %v605 = vsub.s32 0, %v604
    %v606 = vrot.slane %v336, %v605
    %v607 = vlaneseq
    %v608 = vshrl.u32 %v607, 7
    %v609 = vsub.s32 0, %v608
    %v610 = vrot.slane %v341, %v609
    %v611 = vlaneseq
    %v612 = vshrl.u32 %v611, 7
    %v613 = vsub.s32 0, %v612
    %v614 = vrot.slane %v346, %v613
    %v615 = vlaneseq
    %v616 = vshrl.u32 %v615, 7
    %v617 = vsub.s32 0, %v616
    %v618 = vrot.slane %v351, %v617
    %v619 = vlaneseq
    %v620 = vshrl.u32 %v619, 7
    %v621 = vsub.s32 0, %v620
    %v622 = vrot.slane %v356, %v621
    %v623 = vlaneseq
    %v624 = vshrl.u32 %v623, 7
    %v625 = vsub.s32 0, %v624
    %v626 = vrot.slane %v361, %v625
    %v627 = vlaneseq
    %v628 = vshrl.u32 %v627, 7
    %v629 = vsub.s32 0, %v628
    %v630 = vrot.slane %v366, %v629
    %v631 = vlaneseq
    %v632 = vshrl.u32 %v631, 7
    %v633 = vsub.s32 0, %v632
    %v634 = vrot.slane %v371, %v633
    %v635 = vlaneseq
    %v636 = vshrl.u32 %v635, 7
    %v637 = vsub.s32 0, %v636
    %v638 = vrot.slane %v376, %v637
    %v639 = vlaneseq
    %v640 = vshrl.u32 %v639, 7
    %v641 = vsub.s32 0, %v640
    %v642 = vrot.slane %v381, %v641
    %v643 = vlaneseq
    %v644 = vshrl.u32 %v643, 7
    %v645 = vsub.s32 0, %v644
    %v646 = vrot.slane %v386, %v645
    %v647 = vlaneseq
    %v648 = vshrl.u32 %v647, 7
    %v649 = vsub.s32 0, %v648
    %v650 = vrot.slane %v391, %v649
    %v651 = vlaneseq
    %v652 = vshrl.u32 %v651, 7
    %v653 = vsub.s32 0, %v652
    %v654 = vrot.slane %v396, %v653
    %v655 = vmul.f32 %v401, %v530
    %v656 = vmul.f32 %v405, %v534
    %v657 = vmul.f32 %v409, %v538
    %v658 = vmul.f32 %v413, %v542
    %v659 = vmul.f32 %v417, %v546
    %v660 = vmul.f32 %v421, %v550
    %v661 = vmul.f32 %v425, %v554
    %v662 = vmul.f32 %v429, %v558
    %v663 = vmul.f32 %v433, %v562
    %v664 = vmul.f32 %v437, %v566
    %v665 = vmul.f32 %v441, %v570
    %v666 = vmul.f32 %v445, %v574
    %v667 = vmul.f32 %v449, %v578
    %v668 = vmul.f32 %v453, %v582
    %v669 = vmul.f32 %v457, %v586
    %v670 = vmul.f32 %v461, %v590
    %v671 = vmul.f32 %v465, %v594
    %v672 = vmul.f32 %v469, %v598
    %v673 = vmul.f32 %v473, %v602
    %v674 = vmul.f32 %v477, %v606
    %v675 = vmul.f32 %v481, %v610
    %v676 = vmul.f32 %v485, %v614
    %v677 = vmul.f32 %v489, %v618
    %v678 = vmul.f32 %v493, %v622
    %v679 = vmul.f32 %v497, %v626
    %v680 = vmul.f32 %v501, %v630
    %v681 = vmul.f32 %v505, %v634
    %v682 = vmul.f32 %v509, %v638
    %v683 = vmul.f32 %v513, %v642
    %v684 = vmul.f32 %v517, %v646
    %v685 = vmul.f32 %v521, %v650
    %v686 = vmul.f32 %v525, %v654
    %687 = vset.pattern.permute.xlu0 33
    %688 = vperm.xlu0 %687, %v32
    %v689 = vpop.permute.xlu0 %688
    %691 = vset.pattern.permute.xlu0 33
    %692 = vperm.xlu0 %691, %v33
    %v693 = vpop.permute.xlu0 %692
    %695 = vset.pattern.permute.xlu0 33
    %696 = vperm.xlu0 %695, %v34
    %v697 = vpop.permute.xlu0 %696
    %699 = vset.pattern.permute.xlu0 33
    %700 = vperm.xlu0 %699, %v35
    %v701 = vpop.permute.xlu0 %700
    %703 = vset.pattern.permute.xlu0 33
    %704 = vperm.xlu0 %703, %v36
    %v705 = vpop.permute.xlu0 %704
    %707 = vset.pattern.permute.xlu0 33
    %708 = vperm.xlu0 %707, %v37
    %v709 = vpop.permute.xlu0 %708
    %711 = vset.pattern.permute.xlu0 33
    %712 = vperm.xlu0 %711, %v38
    %v713 = vpop.permute.xlu0 %712
    %715 = vset.pattern.permute.xlu0 33
    %716 = vperm.xlu0 %715, %v39
    %v717 = vpop.permute.xlu0 %716
    %719 = vset.pattern.permute.xlu0 33
    %720 = vperm.xlu0 %719, %v40
    %v721 = vpop.permute.xlu0 %720
    %723 = vset.pattern.permute.xlu0 33
    %724 = vperm.xlu0 %723, %v41
    %v725 = vpop.permute.xlu0 %724
    %727 = vset.pattern.permute.xlu0 33
    %728 = vperm.xlu0 %727, %v42
    %v729 = vpop.permute.xlu0 %728
    %731 = vset.pattern.permute.xlu0 33
    %732 = vperm.xlu0 %731, %v43
    %v733 = vpop.permute.xlu0 %732
    %735 = vset.pattern.permute.xlu0 33
    %736 = vperm.xlu0 %735, %v44
    %v737 = vpop.permute.xlu0 %736
    %739 = vset.pattern.permute.xlu0 33
    %740 = vperm.xlu0 %739, %v45
    %v741 = vpop.permute.xlu0 %740
    %743 = vset.pattern.permute.xlu0 33
    %744 = vperm.xlu0 %743, %v46
    %v745 = vpop.permute.xlu0 %744
    %747 = vset.pattern.permute.xlu0 33
    %748 = vperm.xlu0 %747, %v47
    %v749 = vpop.permute.xlu0 %748
    %751 = vset.pattern.permute.xlu0 33
    %752 = vperm.xlu0 %751, %v48
    %v753 = vpop.permute.xlu0 %752
    %755 = vset.pattern.permute.xlu0 33
    %756 = vperm.xlu0 %755, %v49
    %v757 = vpop.permute.xlu0 %756
    %759 = vset.pattern.permute.xlu0 33
    %760 = vperm.xlu0 %759, %v50
    %v761 = vpop.permute.xlu0 %760
    %763 = vset.pattern.permute.xlu0 33
    %764 = vperm.xlu0 %763, %v51
    %v765 = vpop.permute.xlu0 %764
    %767 = vset.pattern.permute.xlu0 33
    %768 = vperm.xlu0 %767, %v52
    %v769 = vpop.permute.xlu0 %768
    %771 = vset.pattern.permute.xlu0 33
    %772 = vperm.xlu0 %771, %v53
    %v773 = vpop.permute.xlu0 %772
    %775 = vset.pattern.permute.xlu0 33
    %776 = vperm.xlu0 %775, %v54
    %v777 = vpop.permute.xlu0 %776
    %779 = vset.pattern.permute.xlu0 33
    %780 = vperm.xlu0 %779, %v55
    %v781 = vpop.permute.xlu0 %780
    %783 = vset.pattern.permute.xlu0 33
    %784 = vperm.xlu0 %783, %v56
    %v785 = vpop.permute.xlu0 %784
    %787 = vset.pattern.permute.xlu0 33
    %788 = vperm.xlu0 %787, %v57
    %v789 = vpop.permute.xlu0 %788
    %791 = vset.pattern.permute.xlu0 33
    %792 = vperm.xlu0 %791, %v58
    %v793 = vpop.permute.xlu0 %792
    %795 = vset.pattern.permute.xlu0 33
    %796 = vperm.xlu0 %795, %v59
    %v797 = vpop.permute.xlu0 %796
    %799 = vset.pattern.permute.xlu0 33
    %800 = vperm.xlu0 %799, %v60
    %v801 = vpop.permute.xlu0 %800
    %803 = vset.pattern.permute.xlu0 33
    %804 = vperm.xlu0 %803, %v61
    %v805 = vpop.permute.xlu0 %804
    %807 = vset.pattern.permute.xlu0 33
    %808 = vperm.xlu0 %807, %v62
    %v809 = vpop.permute.xlu0 %808
    %811 = vset.pattern.permute.xlu0 33
    %812 = vperm.xlu0 %811, %v63
    %v813 = vpop.permute.xlu0 %812
    %v815 = vlaneseq
    %v816 = vshrl.u32 %v815, 7
    %v817 = vsub.s32 1, %v816
    %v818 = vrot.slane %v241, %v817
    %v819 = vlaneseq
    %v820 = vshrl.u32 %v819, 7
    %v821 = vsub.s32 1, %v820
    %v822 = vrot.slane %v246, %v821
    %v823 = vlaneseq
    %v824 = vshrl.u32 %v823, 7
    %v825 = vsub.s32 1, %v824
    %v826 = vrot.slane %v251, %v825
    %v827 = vlaneseq
    %v828 = vshrl.u32 %v827, 7
    %v829 = vsub.s32 1, %v828
    %v830 = vrot.slane %v256, %v829
    %v831 = vlaneseq
    %v832 = vshrl.u32 %v831, 7
    %v833 = vsub.s32 1, %v832
    %v834 = vrot.slane %v261, %v833
    %v835 = vlaneseq
    %v836 = vshrl.u32 %v835, 7
    %v837 = vsub.s32 1, %v836
    %v838 = vrot.slane %v266, %v837
    %v839 = vlaneseq
    %v840 = vshrl.u32 %v839, 7
    %v841 = vsub.s32 1, %v840
    %v842 = vrot.slane %v271, %v841
    %v843 = vlaneseq
    %v844 = vshrl.u32 %v843, 7
    %v845 = vsub.s32 1, %v844
    %v846 = vrot.slane %v276, %v845
    %v847 = vlaneseq
    %v848 = vshrl.u32 %v847, 7
    %v849 = vsub.s32 1, %v848
    %v850 = vrot.slane %v281, %v849
    %v851 = vlaneseq
    %v852 = vshrl.u32 %v851, 7
    %v853 = vsub.s32 1, %v852
    %v854 = vrot.slane %v286, %v853
    %v855 = vlaneseq
    %v856 = vshrl.u32 %v855, 7
    %v857 = vsub.s32 1, %v856
    %v858 = vrot.slane %v291, %v857
    %v859 = vlaneseq
    %v860 = vshrl.u32 %v859, 7
    %v861 = vsub.s32 1, %v860
    %v862 = vrot.slane %v296, %v861
    %v863 = vlaneseq
    %v864 = vshrl.u32 %v863, 7
    %v865 = vsub.s32 1, %v864
    %v866 = vrot.slane %v301, %v865
    %v867 = vlaneseq
    %v868 = vshrl.u32 %v867, 7
    %v869 = vsub.s32 1, %v868
    %v870 = vrot.slane %v306, %v869
    %v871 = vlaneseq
    %v872 = vshrl.u32 %v871, 7
    %v873 = vsub.s32 1, %v872
    %v874 = vrot.slane %v311, %v873
    %v875 = vlaneseq
    %v876 = vshrl.u32 %v875, 7
    %v877 = vsub.s32 1, %v876
    %v878 = vrot.slane %v316, %v877
    %v879 = vlaneseq
    %v880 = vshrl.u32 %v879, 7
    %v881 = vsub.s32 1, %v880
    %v882 = vrot.slane %v321, %v881
    %v883 = vlaneseq
    %v884 = vshrl.u32 %v883, 7
    %v885 = vsub.s32 1, %v884
    %v886 = vrot.slane %v326, %v885
    %v887 = vlaneseq
    %v888 = vshrl.u32 %v887, 7
    %v889 = vsub.s32 1, %v888
    %v890 = vrot.slane %v331, %v889
    %v891 = vlaneseq
    %v892 = vshrl.u32 %v891, 7
    %v893 = vsub.s32 1, %v892
    %v894 = vrot.slane %v336, %v893
    %v895 = vlaneseq
    %v896 = vshrl.u32 %v895, 7
    %v897 = vsub.s32 1, %v896
    %v898 = vrot.slane %v341, %v897
    %v899 = vlaneseq
    %v900 = vshrl.u32 %v899, 7
    %v901 = vsub.s32 1, %v900
    %v902 = vrot.slane %v346, %v901
    %v903 = vlaneseq
    %v904 = vshrl.u32 %v903, 7
    %v905 = vsub.s32 1, %v904
    %v906 = vrot.slane %v351, %v905
    %v907 = vlaneseq
    %v908 = vshrl.u32 %v907, 7
    %v909 = vsub.s32 1, %v908
    %v910 = vrot.slane %v356, %v909
    %v911 = vlaneseq
    %v912 = vshrl.u32 %v911, 7
    %v913 = vsub.s32 1, %v912
    %v914 = vrot.slane %v361, %v913
    %v915 = vlaneseq
    %v916 = vshrl.u32 %v915, 7
    %v917 = vsub.s32 1, %v916
    %v918 = vrot.slane %v366, %v917
    %v919 = vlaneseq
    %v920 = vshrl.u32 %v919, 7
    %v921 = vsub.s32 1, %v920
    %v922 = vrot.slane %v371, %v921
    %v923 = vlaneseq
    %v924 = vshrl.u32 %v923, 7
    %v925 = vsub.s32 1, %v924
    %v926 = vrot.slane %v376, %v925
    %v927 = vlaneseq
    %v928 = vshrl.u32 %v927, 7
    %v929 = vsub.s32 1, %v928
    %v930 = vrot.slane %v381, %v929
    %v931 = vlaneseq
    %v932 = vshrl.u32 %v931, 7
    %v933 = vsub.s32 1, %v932
    %v934 = vrot.slane %v386, %v933
    %v935 = vlaneseq
    %v936 = vshrl.u32 %v935, 7
    %v937 = vsub.s32 1, %v936
    %v938 = vrot.slane %v391, %v937
    %v939 = vlaneseq
    %v940 = vshrl.u32 %v939, 7
    %v941 = vsub.s32 1, %v940
    %v942 = vrot.slane %v396, %v941
    %v943 = vmul.f32 %v689, %v818
    %v944 = vmul.f32 %v693, %v822
    %v945 = vmul.f32 %v697, %v826
    %v946 = vmul.f32 %v701, %v830
    %v947 = vmul.f32 %v705, %v834
    %v948 = vmul.f32 %v709, %v838
    %v949 = vmul.f32 %v713, %v842
    %v950 = vmul.f32 %v717, %v846
    %v951 = vmul.f32 %v721, %v850
    %v952 = vmul.f32 %v725, %v854
    %v953 = vmul.f32 %v729, %v858
    %v954 = vmul.f32 %v733, %v862
    %v955 = vmul.f32 %v737, %v866
    %v956 = vmul.f32 %v741, %v870
    %v957 = vmul.f32 %v745, %v874
    %v958 = vmul.f32 %v749, %v878
    %v959 = vmul.f32 %v753, %v882
    %v960 = vmul.f32 %v757, %v886
    %v961 = vmul.f32 %v761, %v890
    %v962 = vmul.f32 %v765, %v894
    %v963 = vmul.f32 %v769, %v898
    %v964 = vmul.f32 %v773, %v902
    %v965 = vmul.f32 %v777, %v906
    %v966 = vmul.f32 %v781, %v910
    %v967 = vmul.f32 %v785, %v914
    %v968 = vmul.f32 %v789, %v918
    %v969 = vmul.f32 %v793, %v922
    %v970 = vmul.f32 %v797, %v926
    %v971 = vmul.f32 %v801, %v930
    %v972 = vmul.f32 %v805, %v934
    %v973 = vmul.f32 %v809, %v938
    %v974 = vmul.f32 %v813, %v942
    %v975 = vadd.f32 %v655, %v943
    %v976 = vadd.f32 %v656, %v944
    %v977 = vadd.f32 %v657, %v945
    %v978 = vadd.f32 %v658, %v946
    %v979 = vadd.f32 %v659, %v947
    %v980 = vadd.f32 %v660, %v948
    %v981 = vadd.f32 %v661, %v949
    %v982 = vadd.f32 %v662, %v950
    %v983 = vadd.f32 %v663, %v951
    %v984 = vadd.f32 %v664, %v952
    %v985 = vadd.f32 %v665, %v953
    %v986 = vadd.f32 %v666, %v954
    %v987 = vadd.f32 %v667, %v955
    %v988 = vadd.f32 %v668, %v956
    %v989 = vadd.f32 %v669, %v957
    %v990 = vadd.f32 %v670, %v958
    %v991 = vadd.f32 %v671, %v959
    %v992 = vadd.f32 %v672, %v960
    %v993 = vadd.f32 %v673, %v961
    %v994 = vadd.f32 %v674, %v962
    %v995 = vadd.f32 %v675, %v963
    %v996 = vadd.f32 %v676, %v964
    %v997 = vadd.f32 %v677, %v965
    %v998 = vadd.f32 %v678, %v966
    %v999 = vadd.f32 %v679, %v967
    %v1000 = vadd.f32 %v680, %v968
    %v1001 = vadd.f32 %v681, %v969
    %v1002 = vadd.f32 %v682, %v970
    %v1003 = vadd.f32 %v683, %v971
    %v1004 = vadd.f32 %v684, %v972
    %v1005 = vadd.f32 %v685, %v973
    %v1006 = vadd.f32 %v686, %v974
    %1007 = vset.pattern.permute.xlu0 34
    %1008 = vperm.xlu0 %1007, %v32
    %v1009 = vpop.permute.xlu0 %1008
    %1011 = vset.pattern.permute.xlu0 34
    %1012 = vperm.xlu0 %1011, %v33
    %v1013 = vpop.permute.xlu0 %1012
    %1015 = vset.pattern.permute.xlu0 34
    %1016 = vperm.xlu0 %1015, %v34
    %v1017 = vpop.permute.xlu0 %1016
    %1019 = vset.pattern.permute.xlu0 34
    %1020 = vperm.xlu0 %1019, %v35
    %v1021 = vpop.permute.xlu0 %1020
    %1023 = vset.pattern.permute.xlu0 34
    %1024 = vperm.xlu0 %1023, %v36
    %v1025 = vpop.permute.xlu0 %1024
    %1027 = vset.pattern.permute.xlu0 34
    %1028 = vperm.xlu0 %1027, %v37
    %v1029 = vpop.permute.xlu0 %1028
    %1031 = vset.pattern.permute.xlu0 34
    %1032 = vperm.xlu0 %1031, %v38
    %v1033 = vpop.permute.xlu0 %1032
    %1035 = vset.pattern.permute.xlu0 34
    %1036 = vperm.xlu0 %1035, %v39
    %v1037 = vpop.permute.xlu0 %1036
    %1039 = vset.pattern.permute.xlu0 34
    %1040 = vperm.xlu0 %1039, %v40
    %v1041 = vpop.permute.xlu0 %1040
    %1043 = vset.pattern.permute.xlu0 34
    %1044 = vperm.xlu0 %1043, %v41
    %v1045 = vpop.permute.xlu0 %1044
    %1047 = vset.pattern.permute.xlu0 34
    %1048 = vperm.xlu0 %1047, %v42
    %v1049 = vpop.permute.xlu0 %1048
    %1051 = vset.pattern.permute.xlu0 34
    %1052 = vperm.xlu0 %1051, %v43
    %v1053 = vpop.permute.xlu0 %1052
    %1055 = vset.pattern.permute.xlu0 34
    %1056 = vperm.xlu0 %1055, %v44
    %v1057 = vpop.permute.xlu0 %1056
    %1059 = vset.pattern.permute.xlu0 34
    %1060 = vperm.xlu0 %1059, %v45
    %v1061 = vpop.permute.xlu0 %1060
    %1063 = vset.pattern.permute.xlu0 34
    %1064 = vperm.xlu0 %1063, %v46
    %v1065 = vpop.permute.xlu0 %1064
    %1067 = vset.pattern.permute.xlu0 34
    %1068 = vperm.xlu0 %1067, %v47
    %v1069 = vpop.permute.xlu0 %1068
    %1071 = vset.pattern.permute.xlu0 34
    %1072 = vperm.xlu0 %1071, %v48
    %v1073 = vpop.permute.xlu0 %1072
    %1075 = vset.pattern.permute.xlu0 34
    %1076 = vperm.xlu0 %1075, %v49
    %v1077 = vpop.permute.xlu0 %1076
    %1079 = vset.pattern.permute.xlu0 34
    %1080 = vperm.xlu0 %1079, %v50
    %v1081 = vpop.permute.xlu0 %1080
    %1083 = vset.pattern.permute.xlu0 34
    %1084 = vperm.xlu0 %1083, %v51
    %v1085 = vpop.permute.xlu0 %1084
    %1087 = vset.pattern.permute.xlu0 34
    %1088 = vperm.xlu0 %1087, %v52
    %v1089 = vpop.permute.xlu0 %1088
    %1091 = vset.pattern.permute.xlu0 34
    %1092 = vperm.xlu0 %1091, %v53
    %v1093 = vpop.permute.xlu0 %1092
    %1095 = vset.pattern.permute.xlu0 34
    %1096 = vperm.xlu0 %1095, %v54
    %v1097 = vpop.permute.xlu0 %1096
    %1099 = vset.pattern.permute.xlu0 34
    %1100 = vperm.xlu0 %1099, %v55
    %v1101 = vpop.permute.xlu0 %1100
    %1103 = vset.pattern.permute.xlu0 34
    %1104 = vperm.xlu0 %1103, %v56
    %v1105 = vpop.permute.xlu0 %1104
    %1107 = vset.pattern.permute.xlu0 34
    %1108 = vperm.xlu0 %1107, %v57
    %v1109 = vpop.permute.xlu0 %1108
    %1111 = vset.pattern.permute.xlu0 34
    %1112 = vperm.xlu0 %1111, %v58
    %v1113 = vpop.permute.xlu0 %1112
    %1115 = vset.pattern.permute.xlu0 34
    %1116 = vperm.xlu0 %1115, %v59
    %v1117 = vpop.permute.xlu0 %1116
    %1119 = vset.pattern.permute.xlu0 34
    %1120 = vperm.xlu0 %1119, %v60
    %v1121 = vpop.permute.xlu0 %1120
    %1123 = vset.pattern.permute.xlu0 34
    %1124 = vperm.xlu0 %1123, %v61
    %v1125 = vpop.permute.xlu0 %1124
    %1127 = vset.pattern.permute.xlu0 34
    %1128 = vperm.xlu0 %1127, %v62
    %v1129 = vpop.permute.xlu0 %1128
    %1131 = vset.pattern.permute.xlu0 34
    %1132 = vperm.xlu0 %1131, %v63
    %v1133 = vpop.permute.xlu0 %1132
    %v1135 = vlaneseq
    %v1136 = vshrl.u32 %v1135, 7
    %v1137 = vsub.s32 2, %v1136
    %v1138 = vrot.slane %v241, %v1137
    %v1139 = vlaneseq
    %v1140 = vshrl.u32 %v1139, 7
    %v1141 = vsub.s32 2, %v1140
    %v1142 = vrot.slane %v246, %v1141
    %v1143 = vlaneseq
    %v1144 = vshrl.u32 %v1143, 7
    %v1145 = vsub.s32 2, %v1144
    %v1146 = vrot.slane %v251, %v1145
    %v1147 = vlaneseq
    %v1148 = vshrl.u32 %v1147, 7
    %v1149 = vsub.s32 2, %v1148
    %v1150 = vrot.slane %v256, %v1149
    %v1151 = vlaneseq
    %v1152 = vshrl.u32 %v1151, 7
    %v1153 = vsub.s32 2, %v1152
    %v1154 = vrot.slane %v261, %v1153
    %v1155 = vlaneseq
    %v1156 = vshrl.u32 %v1155, 7
    %v1157 = vsub.s32 2, %v1156
    %v1158 = vrot.slane %v266, %v1157
    %v1159 = vlaneseq
    %v1160 = vshrl.u32 %v1159, 7
    %v1161 = vsub.s32 2, %v1160
    %v1162 = vrot.slane %v271, %v1161
    %v1163 = vlaneseq
    %v1164 = vshrl.u32 %v1163, 7
    %v1165 = vsub.s32 2, %v1164
    %v1166 = vrot.slane %v276, %v1165
    %v1167 = vlaneseq
    %v1168 = vshrl.u32 %v1167, 7
    %v1169 = vsub.s32 2, %v1168
    %v1170 = vrot.slane %v281, %v1169
    %v1171 = vlaneseq
    %v1172 = vshrl.u32 %v1171, 7
    %v1173 = vsub.s32 2, %v1172
    %v1174 = vrot.slane %v286, %v1173
    %v1175 = vlaneseq
    %v1176 = vshrl.u32 %v1175, 7
    %v1177 = vsub.s32 2, %v1176
    %v1178 = vrot.slane %v291, %v1177
    %v1179 = vlaneseq
    %v1180 = vshrl.u32 %v1179, 7
    %v1181 = vsub.s32 2, %v1180
    %v1182 = vrot.slane %v296, %v1181
    %v1183 = vlaneseq
    %v1184 = vshrl.u32 %v1183, 7
    %v1185 = vsub.s32 2, %v1184
    %v1186 = vrot.slane %v301, %v1185
    %v1187 = vlaneseq
    %v1188 = vshrl.u32 %v1187, 7
    %v1189 = vsub.s32 2, %v1188
    %v1190 = vrot.slane %v306, %v1189
    %v1191 = vlaneseq
    %v1192 = vshrl.u32 %v1191, 7
    %v1193 = vsub.s32 2, %v1192
    %v1194 = vrot.slane %v311, %v1193
    %v1195 = vlaneseq
    %v1196 = vshrl.u32 %v1195, 7
    %v1197 = vsub.s32 2, %v1196
    %v1198 = vrot.slane %v316, %v1197
    %v1199 = vlaneseq
    %v1200 = vshrl.u32 %v1199, 7
    %v1201 = vsub.s32 2, %v1200
    %v1202 = vrot.slane %v321, %v1201
    %v1203 = vlaneseq
    %v1204 = vshrl.u32 %v1203, 7
    %v1205 = vsub.s32 2, %v1204
    %v1206 = vrot.slane %v326, %v1205
    %v1207 = vlaneseq
    %v1208 = vshrl.u32 %v1207, 7
    %v1209 = vsub.s32 2, %v1208
    %v1210 = vrot.slane %v331, %v1209
    %v1211 = vlaneseq
    %v1212 = vshrl.u32 %v1211, 7
    %v1213 = vsub.s32 2, %v1212
    %v1214 = vrot.slane %v336, %v1213
    %v1215 = vlaneseq
    %v1216 = vshrl.u32 %v1215, 7
    %v1217 = vsub.s32 2, %v1216
    %v1218 = vrot.slane %v341, %v1217
    %v1219 = vlaneseq
    %v1220 = vshrl.u32 %v1219, 7
    %v1221 = vsub.s32 2, %v1220
    %v1222 = vrot.slane %v346, %v1221
    %v1223 = vlaneseq
    %v1224 = vshrl.u32 %v1223, 7
    %v1225 = vsub.s32 2, %v1224
    %v1226 = vrot.slane %v351, %v1225
    %v1227 = vlaneseq
    %v1228 = vshrl.u32 %v1227, 7
    %v1229 = vsub.s32 2, %v1228
    %v1230 = vrot.slane %v356, %v1229
    %v1231 = vlaneseq
    %v1232 = vshrl.u32 %v1231, 7
    %v1233 = vsub.s32 2, %v1232
    %v1234 = vrot.slane %v361, %v1233
    %v1235 = vlaneseq
    %v1236 = vshrl.u32 %v1235, 7
    %v1237 = vsub.s32 2, %v1236
    %v1238 = vrot.slane %v366, %v1237
    %v1239 = vlaneseq
    %v1240 = vshrl.u32 %v1239, 7
    %v1241 = vsub.s32 2, %v1240
    %v1242 = vrot.slane %v371, %v1241
    %v1243 = vlaneseq
    %v1244 = vshrl.u32 %v1243, 7
    %v1245 = vsub.s32 2, %v1244
    %v1246 = vrot.slane %v376, %v1245
    %v1247 = vlaneseq
    %v1248 = vshrl.u32 %v1247, 7
    %v1249 = vsub.s32 2, %v1248
    %v1250 = vrot.slane %v381, %v1249
    %v1251 = vlaneseq
    %v1252 = vshrl.u32 %v1251, 7
    %v1253 = vsub.s32 2, %v1252
    %v1254 = vrot.slane %v386, %v1253
    %v1255 = vlaneseq
    %v1256 = vshrl.u32 %v1255, 7
    %v1257 = vsub.s32 2, %v1256
    %v1258 = vrot.slane %v391, %v1257
    %v1259 = vlaneseq
    %v1260 = vshrl.u32 %v1259, 7
    %v1261 = vsub.s32 2, %v1260
    %v1262 = vrot.slane %v396, %v1261
    %v1263 = vmul.f32 %v1009, %v1138
    %v1264 = vmul.f32 %v1013, %v1142
    %v1265 = vmul.f32 %v1017, %v1146
    %v1266 = vmul.f32 %v1021, %v1150
    %v1267 = vmul.f32 %v1025, %v1154
    %v1268 = vmul.f32 %v1029, %v1158
    %v1269 = vmul.f32 %v1033, %v1162
    %v1270 = vmul.f32 %v1037, %v1166
    %v1271 = vmul.f32 %v1041, %v1170
    %v1272 = vmul.f32 %v1045, %v1174
    %v1273 = vmul.f32 %v1049, %v1178
    %v1274 = vmul.f32 %v1053, %v1182
    %v1275 = vmul.f32 %v1057, %v1186
    %v1276 = vmul.f32 %v1061, %v1190
    %v1277 = vmul.f32 %v1065, %v1194
    %v1278 = vmul.f32 %v1069, %v1198
    %v1279 = vmul.f32 %v1073, %v1202
    %v1280 = vmul.f32 %v1077, %v1206
    %v1281 = vmul.f32 %v1081, %v1210
    %v1282 = vmul.f32 %v1085, %v1214
    %v1283 = vmul.f32 %v1089, %v1218
    %v1284 = vmul.f32 %v1093, %v1222
    %v1285 = vmul.f32 %v1097, %v1226
    %v1286 = vmul.f32 %v1101, %v1230
    %v1287 = vmul.f32 %v1105, %v1234
    %v1288 = vmul.f32 %v1109, %v1238
    %v1289 = vmul.f32 %v1113, %v1242
    %v1290 = vmul.f32 %v1117, %v1246
    %v1291 = vmul.f32 %v1121, %v1250
    %v1292 = vmul.f32 %v1125, %v1254
    %v1293 = vmul.f32 %v1129, %v1258
    %v1294 = vmul.f32 %v1133, %v1262
    %v1295 = vadd.f32 %v975, %v1263
    %v1296 = vadd.f32 %v976, %v1264
    %v1297 = vadd.f32 %v977, %v1265
    %v1298 = vadd.f32 %v978, %v1266
    %v1299 = vadd.f32 %v979, %v1267
    %v1300 = vadd.f32 %v980, %v1268
    %v1301 = vadd.f32 %v981, %v1269
    %v1302 = vadd.f32 %v982, %v1270
    %v1303 = vadd.f32 %v983, %v1271
    %v1304 = vadd.f32 %v984, %v1272
    %v1305 = vadd.f32 %v985, %v1273
    %v1306 = vadd.f32 %v986, %v1274
    %v1307 = vadd.f32 %v987, %v1275
    %v1308 = vadd.f32 %v988, %v1276
    %v1309 = vadd.f32 %v989, %v1277
    %v1310 = vadd.f32 %v990, %v1278
    %v1311 = vadd.f32 %v991, %v1279
    %v1312 = vadd.f32 %v992, %v1280
    %v1313 = vadd.f32 %v993, %v1281
    %v1314 = vadd.f32 %v994, %v1282
    %v1315 = vadd.f32 %v995, %v1283
    %v1316 = vadd.f32 %v996, %v1284
    %v1317 = vadd.f32 %v997, %v1285
    %v1318 = vadd.f32 %v998, %v1286
    %v1319 = vadd.f32 %v999, %v1287
    %v1320 = vadd.f32 %v1000, %v1288
    %v1321 = vadd.f32 %v1001, %v1289
    %v1322 = vadd.f32 %v1002, %v1290
    %v1323 = vadd.f32 %v1003, %v1291
    %v1324 = vadd.f32 %v1004, %v1292
    %v1325 = vadd.f32 %v1005, %v1293
    %v1326 = vadd.f32 %v1006, %v1294
    %1327 = vset.pattern.permute.xlu0 35
    %1328 = vperm.xlu0 %1327, %v32
    %v1329 = vpop.permute.xlu0 %1328
    %1331 = vset.pattern.permute.xlu0 35
    %1332 = vperm.xlu0 %1331, %v33
    %v1333 = vpop.permute.xlu0 %1332
    %1335 = vset.pattern.permute.xlu0 35
    %1336 = vperm.xlu0 %1335, %v34
    %v1337 = vpop.permute.xlu0 %1336
    %1339 = vset.pattern.permute.xlu0 35
    %1340 = vperm.xlu0 %1339, %v35
    %v1341 = vpop.permute.xlu0 %1340
    %1343 = vset.pattern.permute.xlu0 35
    %1344 = vperm.xlu0 %1343, %v36
    %v1345 = vpop.permute.xlu0 %1344
    %1347 = vset.pattern.permute.xlu0 35
    %1348 = vperm.xlu0 %1347, %v37
    %v1349 = vpop.permute.xlu0 %1348
    %1351 = vset.pattern.permute.xlu0 35
    %1352 = vperm.xlu0 %1351, %v38
    %v1353 = vpop.permute.xlu0 %1352
    %1355 = vset.pattern.permute.xlu0 35
    %1356 = vperm.xlu0 %1355, %v39
    %v1357 = vpop.permute.xlu0 %1356
    %1359 = vset.pattern.permute.xlu0 35
    %1360 = vperm.xlu0 %1359, %v40
    %v1361 = vpop.permute.xlu0 %1360
    %1363 = vset.pattern.permute.xlu0 35
    %1364 = vperm.xlu0 %1363, %v41
    %v1365 = vpop.permute.xlu0 %1364
    %1367 = vset.pattern.permute.xlu0 35
    %1368 = vperm.xlu0 %1367, %v42
    %v1369 = vpop.permute.xlu0 %1368
    %1371 = vset.pattern.permute.xlu0 35
    %1372 = vperm.xlu0 %1371, %v43
    %v1373 = vpop.permute.xlu0 %1372
    %1375 = vset.pattern.permute.xlu0 35
    %1376 = vperm.xlu0 %1375, %v44
    %v1377 = vpop.permute.xlu0 %1376
    %1379 = vset.pattern.permute.xlu0 35
    %1380 = vperm.xlu0 %1379, %v45
    %v1381 = vpop.permute.xlu0 %1380
    %1383 = vset.pattern.permute.xlu0 35
    %1384 = vperm.xlu0 %1383, %v46
    %v1385 = vpop.permute.xlu0 %1384
    %1387 = vset.pattern.permute.xlu0 35
    %1388 = vperm.xlu0 %1387, %v47
    %v1389 = vpop.permute.xlu0 %1388
    %1391 = vset.pattern.permute.xlu0 35
    %1392 = vperm.xlu0 %1391, %v48
    %v1393 = vpop.permute.xlu0 %1392
    %1395 = vset.pattern.permute.xlu0 35
    %1396 = vperm.xlu0 %1395, %v49
    %v1397 = vpop.permute.xlu0 %1396
    %1399 = vset.pattern.permute.xlu0 35
    %1400 = vperm.xlu0 %1399, %v50
    %v1401 = vpop.permute.xlu0 %1400
    %1403 = vset.pattern.permute.xlu0 35
    %1404 = vperm.xlu0 %1403, %v51
    %v1405 = vpop.permute.xlu0 %1404
    %1407 = vset.pattern.permute.xlu0 35
    %1408 = vperm.xlu0 %1407, %v52
    %v1409 = vpop.permute.xlu0 %1408
    %1411 = vset.pattern.permute.xlu0 35
    %1412 = vperm.xlu0 %1411, %v53
    %v1413 = vpop.permute.xlu0 %1412
    %1415 = vset.pattern.permute.xlu0 35
    %1416 = vperm.xlu0 %1415, %v54
    %v1417 = vpop.permute.xlu0 %1416
    %1419 = vset.pattern.permute.xlu0 35
    %1420 = vperm.xlu0 %1419, %v55
    %v1421 = vpop.permute.xlu0 %1420
    %1423 = vset.pattern.permute.xlu0 35
    %1424 = vperm.xlu0 %1423, %v56
    %v1425 = vpop.permute.xlu0 %1424
    %1427 = vset.pattern.permute.xlu0 35
    %1428 = vperm.xlu0 %1427, %v57
    %v1429 = vpop.permute.xlu0 %1428
    %1431 = vset.pattern.permute.xlu0 35
    %1432 = vperm.xlu0 %1431, %v58
    %v1433 = vpop.permute.xlu0 %1432
    %1435 = vset.pattern.permute.xlu0 35
    %1436 = vperm.xlu0 %1435, %v59
    %v1437 = vpop.permute.xlu0 %1436
    %1439 = vset.pattern.permute.xlu0 35
    %1440 = vperm.xlu0 %1439, %v60
    %v1441 = vpop.permute.xlu0 %1440
    %1443 = vset.pattern.permute.xlu0 35
    %1444 = vperm.xlu0 %1443, %v61
    %v1445 = vpop.permute.xlu0 %1444
    %1447 = vset.pattern.permute.xlu0 35
    %1448 = vperm.xlu0 %1447, %v62
    %v1449 = vpop.permute.xlu0 %1448
    %1451 = vset.pattern.permute.xlu0 35
    %1452 = vperm.xlu0 %1451, %v63
    %v1453 = vpop.permute.xlu0 %1452
    %v1455 = vlaneseq
    %v1456 = vshrl.u32 %v1455, 7
    %v1457 = vsub.s32 3, %v1456
    %v1458 = vrot.slane %v241, %v1457
    %v1459 = vlaneseq
    %v1460 = vshrl.u32 %v1459, 7
    %v1461 = vsub.s32 3, %v1460
    %v1462 = vrot.slane %v246, %v1461
    %v1463 = vlaneseq
    %v1464 = vshrl.u32 %v1463, 7
    %v1465 = vsub.s32 3, %v1464
    %v1466 = vrot.slane %v251, %v1465
    %v1467 = vlaneseq
    %v1468 = vshrl.u32 %v1467, 7
    %v1469 = vsub.s32 3, %v1468
    %v1470 = vrot.slane %v256, %v1469
    %v1471 = vlaneseq
    %v1472 = vshrl.u32 %v1471, 7
    %v1473 = vsub.s32 3, %v1472
    %v1474 = vrot.slane %v261, %v1473
    %v1475 = vlaneseq
    %v1476 = vshrl.u32 %v1475, 7
    %v1477 = vsub.s32 3, %v1476
    %v1478 = vrot.slane %v266, %v1477
    %v1479 = vlaneseq
    %v1480 = vshrl.u32 %v1479, 7
    %v1481 = vsub.s32 3, %v1480
    %v1482 = vrot.slane %v271, %v1481
    %v1483 = vlaneseq
    %v1484 = vshrl.u32 %v1483, 7
    %v1485 = vsub.s32 3, %v1484
    %v1486 = vrot.slane %v276, %v1485
    %v1487 = vlaneseq
    %v1488 = vshrl.u32 %v1487, 7
    %v1489 = vsub.s32 3, %v1488
    %v1490 = vrot.slane %v281, %v1489
    %v1491 = vlaneseq
    %v1492 = vshrl.u32 %v1491, 7
    %v1493 = vsub.s32 3, %v1492
    %v1494 = vrot.slane %v286, %v1493
    %v1495 = vlaneseq
    %v1496 = vshrl.u32 %v1495, 7
    %v1497 = vsub.s32 3, %v1496
    %v1498 = vrot.slane %v291, %v1497
    %v1499 = vlaneseq
    %v1500 = vshrl.u32 %v1499, 7
    %v1501 = vsub.s32 3, %v1500
    %v1502 = vrot.slane %v296, %v1501
    %v1503 = vlaneseq
    %v1504 = vshrl.u32 %v1503, 7
    %v1505 = vsub.s32 3, %v1504
    %v1506 = vrot.slane %v301, %v1505
    %v1507 = vlaneseq
    %v1508 = vshrl.u32 %v1507, 7
    %v1509 = vsub.s32 3, %v1508
    %v1510 = vrot.slane %v306, %v1509
    %v1511 = vlaneseq
    %v1512 = vshrl.u32 %v1511, 7
    %v1513 = vsub.s32 3, %v1512
    %v1514 = vrot.slane %v311, %v1513
    %v1515 = vlaneseq
    %v1516 = vshrl.u32 %v1515, 7
    %v1517 = vsub.s32 3, %v1516
    %v1518 = vrot.slane %v316, %v1517
    %v1519 = vlaneseq
    %v1520 = vshrl.u32 %v1519, 7
    %v1521 = vsub.s32 3, %v1520
    %v1522 = vrot.slane %v321, %v1521
    %v1523 = vlaneseq
    %v1524 = vshrl.u32 %v1523, 7
    %v1525 = vsub.s32 3, %v1524
    %v1526 = vrot.slane %v326, %v1525
    %v1527 = vlaneseq
    %v1528 = vshrl.u32 %v1527, 7
    %v1529 = vsub.s32 3, %v1528
    %v1530 = vrot.slane %v331, %v1529
    %v1531 = vlaneseq
    %v1532 = vshrl.u32 %v1531, 7
    %v1533 = vsub.s32 3, %v1532
    %v1534 = vrot.slane %v336, %v1533
    %v1535 = vlaneseq
    %v1536 = vshrl.u32 %v1535, 7
    %v1537 = vsub.s32 3, %v1536
    %v1538 = vrot.slane %v341, %v1537
    %v1539 = vlaneseq
    %v1540 = vshrl.u32 %v1539, 7
    %v1541 = vsub.s32 3, %v1540
    %v1542 = vrot.slane %v346, %v1541
    %v1543 = vlaneseq
    %v1544 = vshrl.u32 %v1543, 7
    %v1545 = vsub.s32 3, %v1544
    %v1546 = vrot.slane %v351, %v1545
    %v1547 = vlaneseq
    %v1548 = vshrl.u32 %v1547, 7
    %v1549 = vsub.s32 3, %v1548
    %v1550 = vrot.slane %v356, %v1549
    %v1551 = vlaneseq
    %v1552 = vshrl.u32 %v1551, 7
    %v1553 = vsub.s32 3, %v1552
    %v1554 = vrot.slane %v361, %v1553
    %v1555 = vlaneseq
    %v1556 = vshrl.u32 %v1555, 7
    %v1557 = vsub.s32 3, %v1556
    %v1558 = vrot.slane %v366, %v1557
    %v1559 = vlaneseq
    %v1560 = vshrl.u32 %v1559, 7
    %v1561 = vsub.s32 3, %v1560
    %v1562 = vrot.slane %v371, %v1561
    %v1563 = vlaneseq
    %v1564 = vshrl.u32 %v1563, 7
    %v1565 = vsub.s32 3, %v1564
    %v1566 = vrot.slane %v376, %v1565
    %v1567 = vlaneseq
    %v1568 = vshrl.u32 %v1567, 7
    %v1569 = vsub.s32 3, %v1568
    %v1570 = vrot.slane %v381, %v1569
    %v1571 = vlaneseq
    %v1572 = vshrl.u32 %v1571, 7
    %v1573 = vsub.s32 3, %v1572
    %v1574 = vrot.slane %v386, %v1573
    %v1575 = vlaneseq
    %v1576 = vshrl.u32 %v1575, 7
    %v1577 = vsub.s32 3, %v1576
    %v1578 = vrot.slane %v391, %v1577
    %v1579 = vlaneseq
    %v1580 = vshrl.u32 %v1579, 7
    %v1581 = vsub.s32 3, %v1580
    %v1582 = vrot.slane %v396, %v1581
    %v1583 = vmul.f32 %v1329, %v1458
    %v1584 = vmul.f32 %v1333, %v1462
    %v1585 = vmul.f32 %v1337, %v1466
    %v1586 = vmul.f32 %v1341, %v1470
    %v1587 = vmul.f32 %v1345, %v1474
    %v1588 = vmul.f32 %v1349, %v1478
    %v1589 = vmul.f32 %v1353, %v1482
    %v1590 = vmul.f32 %v1357, %v1486
    %v1591 = vmul.f32 %v1361, %v1490
    %v1592 = vmul.f32 %v1365, %v1494
    %v1593 = vmul.f32 %v1369, %v1498
    %v1594 = vmul.f32 %v1373, %v1502
    %v1595 = vmul.f32 %v1377, %v1506
    %v1596 = vmul.f32 %v1381, %v1510
    %v1597 = vmul.f32 %v1385, %v1514
    %v1598 = vmul.f32 %v1389, %v1518
    %v1599 = vmul.f32 %v1393, %v1522
    %v1600 = vmul.f32 %v1397, %v1526
    %v1601 = vmul.f32 %v1401, %v1530
    %v1602 = vmul.f32 %v1405, %v1534
    %v1603 = vmul.f32 %v1409, %v1538
    %v1604 = vmul.f32 %v1413, %v1542
    %v1605 = vmul.f32 %v1417, %v1546
    %v1606 = vmul.f32 %v1421, %v1550
    %v1607 = vmul.f32 %v1425, %v1554
    %v1608 = vmul.f32 %v1429, %v1558
    %v1609 = vmul.f32 %v1433, %v1562
    %v1610 = vmul.f32 %v1437, %v1566
    %v1611 = vmul.f32 %v1441, %v1570
    %v1612 = vmul.f32 %v1445, %v1574
    %v1613 = vmul.f32 %v1449, %v1578
    %v1614 = vmul.f32 %v1453, %v1582
    %v1615 = vadd.f32 %v1295, %v1583
    %v1616 = vadd.f32 %v1296, %v1584
    %v1617 = vadd.f32 %v1297, %v1585
    %v1618 = vadd.f32 %v1298, %v1586
    %v1619 = vadd.f32 %v1299, %v1587
    %v1620 = vadd.f32 %v1300, %v1588
    %v1621 = vadd.f32 %v1301, %v1589
    %v1622 = vadd.f32 %v1302, %v1590
    %v1623 = vadd.f32 %v1303, %v1591
    %v1624 = vadd.f32 %v1304, %v1592
    %v1625 = vadd.f32 %v1305, %v1593
    %v1626 = vadd.f32 %v1306, %v1594
    %v1627 = vadd.f32 %v1307, %v1595
    %v1628 = vadd.f32 %v1308, %v1596
    %v1629 = vadd.f32 %v1309, %v1597
    %v1630 = vadd.f32 %v1310, %v1598
    %v1631 = vadd.f32 %v1311, %v1599
    %v1632 = vadd.f32 %v1312, %v1600
    %v1633 = vadd.f32 %v1313, %v1601
    %v1634 = vadd.f32 %v1314, %v1602
    %v1635 = vadd.f32 %v1315, %v1603
    %v1636 = vadd.f32 %v1316, %v1604
    %v1637 = vadd.f32 %v1317, %v1605
    %v1638 = vadd.f32 %v1318, %v1606
    %v1639 = vadd.f32 %v1319, %v1607
    %v1640 = vadd.f32 %v1320, %v1608
    %v1641 = vadd.f32 %v1321, %v1609
    %v1642 = vadd.f32 %v1322, %v1610
    %v1643 = vadd.f32 %v1323, %v1611
    %v1644 = vadd.f32 %v1324, %v1612
    %v1645 = vadd.f32 %v1325, %v1613
    %v1646 = vadd.f32 %v1326, %v1614
    %1647 = vset.pattern.permute.xlu0 36
    %1648 = vperm.xlu0 %1647, %v32
    %v1649 = vpop.permute.xlu0 %1648
    %1651 = vset.pattern.permute.xlu0 36
    %1652 = vperm.xlu0 %1651, %v33
    %v1653 = vpop.permute.xlu0 %1652
    %1655 = vset.pattern.permute.xlu0 36
    %1656 = vperm.xlu0 %1655, %v34
    %v1657 = vpop.permute.xlu0 %1656
    %1659 = vset.pattern.permute.xlu0 36
    %1660 = vperm.xlu0 %1659, %v35
    %v1661 = vpop.permute.xlu0 %1660
    %1663 = vset.pattern.permute.xlu0 36
    %1664 = vperm.xlu0 %1663, %v36
    %v1665 = vpop.permute.xlu0 %1664
    %1667 = vset.pattern.permute.xlu0 36
    %1668 = vperm.xlu0 %1667, %v37
    %v1669 = vpop.permute.xlu0 %1668
    %1671 = vset.pattern.permute.xlu0 36
    %1672 = vperm.xlu0 %1671, %v38
    %v1673 = vpop.permute.xlu0 %1672
    %1675 = vset.pattern.permute.xlu0 36
    %1676 = vperm.xlu0 %1675, %v39
    %v1677 = vpop.permute.xlu0 %1676
    %1679 = vset.pattern.permute.xlu0 36
    %1680 = vperm.xlu0 %1679, %v40
    %v1681 = vpop.permute.xlu0 %1680
    %1683 = vset.pattern.permute.xlu0 36
    %1684 = vperm.xlu0 %1683, %v41
    %v1685 = vpop.permute.xlu0 %1684
    %1687 = vset.pattern.permute.xlu0 36
    %1688 = vperm.xlu0 %1687, %v42
    %v1689 = vpop.permute.xlu0 %1688
    %1691 = vset.pattern.permute.xlu0 36
    %1692 = vperm.xlu0 %1691, %v43
    %v1693 = vpop.permute.xlu0 %1692
    %1695 = vset.pattern.permute.xlu0 36
    %1696 = vperm.xlu0 %1695, %v44
    %v1697 = vpop.permute.xlu0 %1696
    %1699 = vset.pattern.permute.xlu0 36
    %1700 = vperm.xlu0 %1699, %v45
    %v1701 = vpop.permute.xlu0 %1700
    %1703 = vset.pattern.permute.xlu0 36
    %1704 = vperm.xlu0 %1703, %v46
    %v1705 = vpop.permute.xlu0 %1704
    %1707 = vset.pattern.permute.xlu0 36
    %1708 = vperm.xlu0 %1707, %v47
    %v1709 = vpop.permute.xlu0 %1708
    %1711 = vset.pattern.permute.xlu0 36
    %1712 = vperm.xlu0 %1711, %v48
    %v1713 = vpop.permute.xlu0 %1712
    %1715 = vset.pattern.permute.xlu0 36
    %1716 = vperm.xlu0 %1715, %v49
    %v1717 = vpop.permute.xlu0 %1716
    %1719 = vset.pattern.permute.xlu0 36
    %1720 = vperm.xlu0 %1719, %v50
    %v1721 = vpop.permute.xlu0 %1720
    %1723 = vset.pattern.permute.xlu0 36
    %1724 = vperm.xlu0 %1723, %v51
    %v1725 = vpop.permute.xlu0 %1724
    %1727 = vset.pattern.permute.xlu0 36
    %1728 = vperm.xlu0 %1727, %v52
    %v1729 = vpop.permute.xlu0 %1728
    %1731 = vset.pattern.permute.xlu0 36
    %1732 = vperm.xlu0 %1731, %v53
    %v1733 = vpop.permute.xlu0 %1732
    %1735 = vset.pattern.permute.xlu0 36
    %1736 = vperm.xlu0 %1735, %v54
    %v1737 = vpop.permute.xlu0 %1736
    %1739 = vset.pattern.permute.xlu0 36
    %1740 = vperm.xlu0 %1739, %v55
    %v1741 = vpop.permute.xlu0 %1740
    %1743 = vset.pattern.permute.xlu0 36
    %1744 = vperm.xlu0 %1743, %v56
    %v1745 = vpop.permute.xlu0 %1744
    %1747 = vset.pattern.permute.xlu0 36
    %1748 = vperm.xlu0 %1747, %v57
    %v1749 = vpop.permute.xlu0 %1748
    %1751 = vset.pattern.permute.xlu0 36
    %1752 = vperm.xlu0 %1751, %v58
    %v1753 = vpop.permute.xlu0 %1752
    %1755 = vset.pattern.permute.xlu0 36
    %1756 = vperm.xlu0 %1755, %v59
    %v1757 = vpop.permute.xlu0 %1756
    %1759 = vset.pattern.permute.xlu0 36
    %1760 = vperm.xlu0 %1759, %v60
    %v1761 = vpop.permute.xlu0 %1760
    %1763 = vset.pattern.permute.xlu0 36
    %1764 = vperm.xlu0 %1763, %v61
    %v1765 = vpop.permute.xlu0 %1764
    %1767 = vset.pattern.permute.xlu0 36
    %1768 = vperm.xlu0 %1767, %v62
    %v1769 = vpop.permute.xlu0 %1768
    %1771 = vset.pattern.permute.xlu0 36
    %1772 = vperm.xlu0 %1771, %v63
    %v1773 = vpop.permute.xlu0 %1772
    %v1775 = vlaneseq
    %v1776 = vshrl.u32 %v1775, 7
    %v1777 = vsub.s32 4, %v1776
    %v1778 = vrot.slane %v241, %v1777
    %v1779 = vlaneseq
    %v1780 = vshrl.u32 %v1779, 7
    %v1781 = vsub.s32 4, %v1780
    %v1782 = vrot.slane %v246, %v1781
    %v1783 = vlaneseq
    %v1784 = vshrl.u32 %v1783, 7
    %v1785 = vsub.s32 4, %v1784
    %v1786 = vrot.slane %v251, %v1785
    %v1787 = vlaneseq
    %v1788 = vshrl.u32 %v1787, 7
    %v1789 = vsub.s32 4, %v1788
    %v1790 = vrot.slane %v256, %v1789
    %v1791 = vlaneseq
    %v1792 = vshrl.u32 %v1791, 7
    %v1793 = vsub.s32 4, %v1792
    %v1794 = vrot.slane %v261, %v1793
    %v1795 = vlaneseq
    %v1796 = vshrl.u32 %v1795, 7
    %v1797 = vsub.s32 4, %v1796
    %v1798 = vrot.slane %v266, %v1797
    %v1799 = vlaneseq
    %v1800 = vshrl.u32 %v1799, 7
    %v1801 = vsub.s32 4, %v1800
    %v1802 = vrot.slane %v271, %v1801
    %v1803 = vlaneseq
    %v1804 = vshrl.u32 %v1803, 7
    %v1805 = vsub.s32 4, %v1804
    %v1806 = vrot.slane %v276, %v1805
    %v1807 = vlaneseq
    %v1808 = vshrl.u32 %v1807, 7
    %v1809 = vsub.s32 4, %v1808
    %v1810 = vrot.slane %v281, %v1809
    %v1811 = vlaneseq
    %v1812 = vshrl.u32 %v1811, 7
    %v1813 = vsub.s32 4, %v1812
    %v1814 = vrot.slane %v286, %v1813
    %v1815 = vlaneseq
    %v1816 = vshrl.u32 %v1815, 7
    %v1817 = vsub.s32 4, %v1816
    %v1818 = vrot.slane %v291, %v1817
    %v1819 = vlaneseq
    %v1820 = vshrl.u32 %v1819, 7
    %v1821 = vsub.s32 4, %v1820
    %v1822 = vrot.slane %v296, %v1821
    %v1823 = vlaneseq
    %v1824 = vshrl.u32 %v1823, 7
    %v1825 = vsub.s32 4, %v1824
    %v1826 = vrot.slane %v301, %v1825
    %v1827 = vlaneseq
    %v1828 = vshrl.u32 %v1827, 7
    %v1829 = vsub.s32 4, %v1828
    %v1830 = vrot.slane %v306, %v1829
    %v1831 = vlaneseq
    %v1832 = vshrl.u32 %v1831, 7
    %v1833 = vsub.s32 4, %v1832
    %v1834 = vrot.slane %v311, %v1833
    %v1835 = vlaneseq
    %v1836 = vshrl.u32 %v1835, 7
    %v1837 = vsub.s32 4, %v1836
    %v1838 = vrot.slane %v316, %v1837
    %v1839 = vlaneseq
    %v1840 = vshrl.u32 %v1839, 7
    %v1841 = vsub.s32 4, %v1840
    %v1842 = vrot.slane %v321, %v1841
    %v1843 = vlaneseq
    %v1844 = vshrl.u32 %v1843, 7
    %v1845 = vsub.s32 4, %v1844
    %v1846 = vrot.slane %v326, %v1845
    %v1847 = vlaneseq
    %v1848 = vshrl.u32 %v1847, 7
    %v1849 = vsub.s32 4, %v1848
    %v1850 = vrot.slane %v331, %v1849
    %v1851 = vlaneseq
    %v1852 = vshrl.u32 %v1851, 7
    %v1853 = vsub.s32 4, %v1852
    %v1854 = vrot.slane %v336, %v1853
    %v1855 = vlaneseq
    %v1856 = vshrl.u32 %v1855, 7
    %v1857 = vsub.s32 4, %v1856
    %v1858 = vrot.slane %v341, %v1857
    %v1859 = vlaneseq
    %v1860 = vshrl.u32 %v1859, 7
    %v1861 = vsub.s32 4, %v1860
    %v1862 = vrot.slane %v346, %v1861
    %v1863 = vlaneseq
    %v1864 = vshrl.u32 %v1863, 7
    %v1865 = vsub.s32 4, %v1864
    %v1866 = vrot.slane %v351, %v1865
    %v1867 = vlaneseq
    %v1868 = vshrl.u32 %v1867, 7
    %v1869 = vsub.s32 4, %v1868
    %v1870 = vrot.slane %v356, %v1869
    %v1871 = vlaneseq
    %v1872 = vshrl.u32 %v1871, 7
    %v1873 = vsub.s32 4, %v1872
    %v1874 = vrot.slane %v361, %v1873
    %v1875 = vlaneseq
    %v1876 = vshrl.u32 %v1875, 7
    %v1877 = vsub.s32 4, %v1876
    %v1878 = vrot.slane %v366, %v1877
    %v1879 = vlaneseq
    %v1880 = vshrl.u32 %v1879, 7
    %v1881 = vsub.s32 4, %v1880
    %v1882 = vrot.slane %v371, %v1881
    %v1883 = vlaneseq
    %v1884 = vshrl.u32 %v1883, 7
    %v1885 = vsub.s32 4, %v1884
    %v1886 = vrot.slane %v376, %v1885
    %v1887 = vlaneseq
    %v1888 = vshrl.u32 %v1887, 7
    %v1889 = vsub.s32 4, %v1888
    %v1890 = vrot.slane %v381, %v1889
    %v1891 = vlaneseq
    %v1892 = vshrl.u32 %v1891, 7
    %v1893 = vsub.s32 4, %v1892
    %v1894 = vrot.slane %v386, %v1893
    %v1895 = vlaneseq
    %v1896 = vshrl.u32 %v1895, 7
    %v1897 = vsub.s32 4, %v1896
    %v1898 = vrot.slane %v391, %v1897
    %v1899 = vlaneseq
    %v1900 = vshrl.u32 %v1899, 7
    %v1901 = vsub.s32 4, %v1900
    %v1902 = vrot.slane %v396, %v1901
    %v1903 = vmul.f32 %v1649, %v1778
    %v1904 = vmul.f32 %v1653, %v1782
    %v1905 = vmul.f32 %v1657, %v1786
    %v1906 = vmul.f32 %v1661, %v1790
    %v1907 = vmul.f32 %v1665, %v1794
    %v1908 = vmul.f32 %v1669, %v1798
    %v1909 = vmul.f32 %v1673, %v1802
    %v1910 = vmul.f32 %v1677, %v1806
    %v1911 = vmul.f32 %v1681, %v1810
    %v1912 = vmul.f32 %v1685, %v1814
    %v1913 = vmul.f32 %v1689, %v1818
    %v1914 = vmul.f32 %v1693, %v1822
    %v1915 = vmul.f32 %v1697, %v1826
    %v1916 = vmul.f32 %v1701, %v1830
    %v1917 = vmul.f32 %v1705, %v1834
    %v1918 = vmul.f32 %v1709, %v1838
    %v1919 = vmul.f32 %v1713, %v1842
    %v1920 = vmul.f32 %v1717, %v1846
    %v1921 = vmul.f32 %v1721, %v1850
    %v1922 = vmul.f32 %v1725, %v1854
    %v1923 = vmul.f32 %v1729, %v1858
    %v1924 = vmul.f32 %v1733, %v1862
    %v1925 = vmul.f32 %v1737, %v1866
    %v1926 = vmul.f32 %v1741, %v1870
    %v1927 = vmul.f32 %v1745, %v1874
    %v1928 = vmul.f32 %v1749, %v1878
    %v1929 = vmul.f32 %v1753, %v1882
    %v1930 = vmul.f32 %v1757, %v1886
    %v1931 = vmul.f32 %v1761, %v1890
    %v1932 = vmul.f32 %v1765, %v1894
    %v1933 = vmul.f32 %v1769, %v1898
    %v1934 = vmul.f32 %v1773, %v1902
    %v1935 = vadd.f32 %v1615, %v1903
    %v1936 = vadd.f32 %v1616, %v1904
    %v1937 = vadd.f32 %v1617, %v1905
    %v1938 = vadd.f32 %v1618, %v1906
    %v1939 = vadd.f32 %v1619, %v1907
    %v1940 = vadd.f32 %v1620, %v1908
    %v1941 = vadd.f32 %v1621, %v1909
    %v1942 = vadd.f32 %v1622, %v1910
    %v1943 = vadd.f32 %v1623, %v1911
    %v1944 = vadd.f32 %v1624, %v1912
    %v1945 = vadd.f32 %v1625, %v1913
    %v1946 = vadd.f32 %v1626, %v1914
    %v1947 = vadd.f32 %v1627, %v1915
    %v1948 = vadd.f32 %v1628, %v1916
    %v1949 = vadd.f32 %v1629, %v1917
    %v1950 = vadd.f32 %v1630, %v1918
    %v1951 = vadd.f32 %v1631, %v1919
    %v1952 = vadd.f32 %v1632, %v1920
    %v1953 = vadd.f32 %v1633, %v1921
    %v1954 = vadd.f32 %v1634, %v1922
    %v1955 = vadd.f32 %v1635, %v1923
    %v1956 = vadd.f32 %v1636, %v1924
    %v1957 = vadd.f32 %v1637, %v1925
    %v1958 = vadd.f32 %v1638, %v1926
    %v1959 = vadd.f32 %v1639, %v1927
    %v1960 = vadd.f32 %v1640, %v1928
    %v1961 = vadd.f32 %v1641, %v1929
    %v1962 = vadd.f32 %v1642, %v1930
    %v1963 = vadd.f32 %v1643, %v1931
    %v1964 = vadd.f32 %v1644, %v1932
    %v1965 = vadd.f32 %v1645, %v1933
    %v1966 = vadd.f32 %v1646, %v1934
    %1967 = vset.pattern.permute.xlu0 37
    %1968 = vperm.xlu0 %1967, %v32
    %v1969 = vpop.permute.xlu0 %1968
    %1971 = vset.pattern.permute.xlu0 37
    %1972 = vperm.xlu0 %1971, %v33
    %v1973 = vpop.permute.xlu0 %1972
    %1975 = vset.pattern.permute.xlu0 37
    %1976 = vperm.xlu0 %1975, %v34
    %v1977 = vpop.permute.xlu0 %1976
    %1979 = vset.pattern.permute.xlu0 37
    %1980 = vperm.xlu0 %1979, %v35
    %v1981 = vpop.permute.xlu0 %1980
    %1983 = vset.pattern.permute.xlu0 37
    %1984 = vperm.xlu0 %1983, %v36
    %v1985 = vpop.permute.xlu0 %1984
    %1987 = vset.pattern.permute.xlu0 37
    %1988 = vperm.xlu0 %1987, %v37
    %v1989 = vpop.permute.xlu0 %1988
    %1991 = vset.pattern.permute.xlu0 37
    %1992 = vperm.xlu0 %1991, %v38
    %v1993 = vpop.permute.xlu0 %1992
    %1995 = vset.pattern.permute.xlu0 37
    %1996 = vperm.xlu0 %1995, %v39
    %v1997 = vpop.permute.xlu0 %1996
    %1999 = vset.pattern.permute.xlu0 37
    %2000 = vperm.xlu0 %1999, %v40
    %v2001 = vpop.permute.xlu0 %2000
    %2003 = vset.pattern.permute.xlu0 37
    %2004 = vperm.xlu0 %2003, %v41
    %v2005 = vpop.permute.xlu0 %2004
    %2007 = vset.pattern.permute.xlu0 37
    %2008 = vperm.xlu0 %2007, %v42
    %v2009 = vpop.permute.xlu0 %2008
    %2011 = vset.pattern.permute.xlu0 37
    %2012 = vperm.xlu0 %2011, %v43
    %v2013 = vpop.permute.xlu0 %2012
    %2015 = vset.pattern.permute.xlu0 37
    %2016 = vperm.xlu0 %2015, %v44
    %v2017 = vpop.permute.xlu0 %2016
    %2019 = vset.pattern.permute.xlu0 37
    %2020 = vperm.xlu0 %2019, %v45
    %v2021 = vpop.permute.xlu0 %2020
    %2023 = vset.pattern.permute.xlu0 37
    %2024 = vperm.xlu0 %2023, %v46
    %v2025 = vpop.permute.xlu0 %2024
    %2027 = vset.pattern.permute.xlu0 37
    %2028 = vperm.xlu0 %2027, %v47
    %v2029 = vpop.permute.xlu0 %2028
    %2031 = vset.pattern.permute.xlu0 37
    %2032 = vperm.xlu0 %2031, %v48
    %v2033 = vpop.permute.xlu0 %2032
    %2035 = vset.pattern.permute.xlu0 37
    %2036 = vperm.xlu0 %2035, %v49
    %v2037 = vpop.permute.xlu0 %2036
    %2039 = vset.pattern.permute.xlu0 37
    %2040 = vperm.xlu0 %2039, %v50
    %v2041 = vpop.permute.xlu0 %2040
    %2043 = vset.pattern.permute.xlu0 37
    %2044 = vperm.xlu0 %2043, %v51
    %v2045 = vpop.permute.xlu0 %2044
    %2047 = vset.pattern.permute.xlu0 37
    %2048 = vperm.xlu0 %2047, %v52
    %v2049 = vpop.permute.xlu0 %2048
    %2051 = vset.pattern.permute.xlu0 37
    %2052 = vperm.xlu0 %2051, %v53
    %v2053 = vpop.permute.xlu0 %2052
    %2055 = vset.pattern.permute.xlu0 37
    %2056 = vperm.xlu0 %2055, %v54
    %v2057 = vpop.permute.xlu0 %2056
    %2059 = vset.pattern.permute.xlu0 37
    %2060 = vperm.xlu0 %2059, %v55
    %v2061 = vpop.permute.xlu0 %2060
    %2063 = vset.pattern.permute.xlu0 37
    %2064 = vperm.xlu0 %2063, %v56
    %v2065 = vpop.permute.xlu0 %2064
    %2067 = vset.pattern.permute.xlu0 37
    %2068 = vperm.xlu0 %2067, %v57
    %v2069 = vpop.permute.xlu0 %2068
    %2071 = vset.pattern.permute.xlu0 37
    %2072 = vperm.xlu0 %2071, %v58
    %v2073 = vpop.permute.xlu0 %2072
    %2075 = vset.pattern.permute.xlu0 37
    %2076 = vperm.xlu0 %2075, %v59
    %v2077 = vpop.permute.xlu0 %2076
    %2079 = vset.pattern.permute.xlu0 37
    %2080 = vperm.xlu0 %2079, %v60
    %v2081 = vpop.permute.xlu0 %2080
    %2083 = vset.pattern.permute.xlu0 37
    %2084 = vperm.xlu0 %2083, %v61
    %v2085 = vpop.permute.xlu0 %2084
    %2087 = vset.pattern.permute.xlu0 37
    %2088 = vperm.xlu0 %2087, %v62
    %v2089 = vpop.permute.xlu0 %2088
    %2091 = vset.pattern.permute.xlu0 37
    %2092 = vperm.xlu0 %2091, %v63
    %v2093 = vpop.permute.xlu0 %2092
    %v2095 = vlaneseq
    %v2096 = vshrl.u32 %v2095, 7
    %v2097 = vsub.s32 5, %v2096
    %v2098 = vrot.slane %v241, %v2097
    %v2099 = vlaneseq
    %v2100 = vshrl.u32 %v2099, 7
    %v2101 = vsub.s32 5, %v2100
    %v2102 = vrot.slane %v246, %v2101
    %v2103 = vlaneseq
    %v2104 = vshrl.u32 %v2103, 7
    %v2105 = vsub.s32 5, %v2104
    %v2106 = vrot.slane %v251, %v2105
    %v2107 = vlaneseq
    %v2108 = vshrl.u32 %v2107, 7
    %v2109 = vsub.s32 5, %v2108
    %v2110 = vrot.slane %v256, %v2109
    %v2111 = vlaneseq
    %v2112 = vshrl.u32 %v2111, 7
    %v2113 = vsub.s32 5, %v2112
    %v2114 = vrot.slane %v261, %v2113
    %v2115 = vlaneseq
    %v2116 = vshrl.u32 %v2115, 7
    %v2117 = vsub.s32 5, %v2116
    %v2118 = vrot.slane %v266, %v2117
    %v2119 = vlaneseq
    %v2120 = vshrl.u32 %v2119, 7
    %v2121 = vsub.s32 5, %v2120
    %v2122 = vrot.slane %v271, %v2121
    %v2123 = vlaneseq
    %v2124 = vshrl.u32 %v2123, 7
    %v2125 = vsub.s32 5, %v2124
    %v2126 = vrot.slane %v276, %v2125
    %v2127 = vlaneseq
    %v2128 = vshrl.u32 %v2127, 7
    %v2129 = vsub.s32 5, %v2128
    %v2130 = vrot.slane %v281, %v2129
    %v2131 = vlaneseq
    %v2132 = vshrl.u32 %v2131, 7
    %v2133 = vsub.s32 5, %v2132
    %v2134 = vrot.slane %v286, %v2133
    %v2135 = vlaneseq
    %v2136 = vshrl.u32 %v2135, 7
    %v2137 = vsub.s32 5, %v2136
    %v2138 = vrot.slane %v291, %v2137
    %v2139 = vlaneseq
    %v2140 = vshrl.u32 %v2139, 7
    %v2141 = vsub.s32 5, %v2140
    %v2142 = vrot.slane %v296, %v2141
    %v2143 = vlaneseq
    %v2144 = vshrl.u32 %v2143, 7
    %v2145 = vsub.s32 5, %v2144
    %v2146 = vrot.slane %v301, %v2145
    %v2147 = vlaneseq
    %v2148 = vshrl.u32 %v2147, 7
    %v2149 = vsub.s32 5, %v2148
    %v2150 = vrot.slane %v306, %v2149
    %v2151 = vlaneseq
    %v2152 = vshrl.u32 %v2151, 7
    %v2153 = vsub.s32 5, %v2152
    %v2154 = vrot.slane %v311, %v2153
    %v2155 = vlaneseq
    %v2156 = vshrl.u32 %v2155, 7
    %v2157 = vsub.s32 5, %v2156
    %v2158 = vrot.slane %v316, %v2157
    %v2159 = vlaneseq
    %v2160 = vshrl.u32 %v2159, 7
    %v2161 = vsub.s32 5, %v2160
    %v2162 = vrot.slane %v321, %v2161
    %v2163 = vlaneseq
    %v2164 = vshrl.u32 %v2163, 7
    %v2165 = vsub.s32 5, %v2164
    %v2166 = vrot.slane %v326, %v2165
    %v2167 = vlaneseq
    %v2168 = vshrl.u32 %v2167, 7
    %v2169 = vsub.s32 5, %v2168
    %v2170 = vrot.slane %v331, %v2169
    %v2171 = vlaneseq
    %v2172 = vshrl.u32 %v2171, 7
    %v2173 = vsub.s32 5, %v2172
    %v2174 = vrot.slane %v336, %v2173
    %v2175 = vlaneseq
    %v2176 = vshrl.u32 %v2175, 7
    %v2177 = vsub.s32 5, %v2176
    %v2178 = vrot.slane %v341, %v2177
    %v2179 = vlaneseq
    %v2180 = vshrl.u32 %v2179, 7
    %v2181 = vsub.s32 5, %v2180
    %v2182 = vrot.slane %v346, %v2181
    %v2183 = vlaneseq
    %v2184 = vshrl.u32 %v2183, 7
    %v2185 = vsub.s32 5, %v2184
    %v2186 = vrot.slane %v351, %v2185
    %v2187 = vlaneseq
    %v2188 = vshrl.u32 %v2187, 7
    %v2189 = vsub.s32 5, %v2188
    %v2190 = vrot.slane %v356, %v2189
    %v2191 = vlaneseq
    %v2192 = vshrl.u32 %v2191, 7
    %v2193 = vsub.s32 5, %v2192
    %v2194 = vrot.slane %v361, %v2193
    %v2195 = vlaneseq
    %v2196 = vshrl.u32 %v2195, 7
    %v2197 = vsub.s32 5, %v2196
    %v2198 = vrot.slane %v366, %v2197
    %v2199 = vlaneseq
    %v2200 = vshrl.u32 %v2199, 7
    %v2201 = vsub.s32 5, %v2200
    %v2202 = vrot.slane %v371, %v2201
    %v2203 = vlaneseq
    %v2204 = vshrl.u32 %v2203, 7
    %v2205 = vsub.s32 5, %v2204
    %v2206 = vrot.slane %v376, %v2205
    %v2207 = vlaneseq
    %v2208 = vshrl.u32 %v2207, 7
    %v2209 = vsub.s32 5, %v2208
    %v2210 = vrot.slane %v381, %v2209
    %v2211 = vlaneseq
    %v2212 = vshrl.u32 %v2211, 7
    %v2213 = vsub.s32 5, %v2212
    %v2214 = vrot.slane %v386, %v2213
    %v2215 = vlaneseq
    %v2216 = vshrl.u32 %v2215, 7
    %v2217 = vsub.s32 5, %v2216
    %v2218 = vrot.slane %v391, %v2217
    %v2219 = vlaneseq
    %v2220 = vshrl.u32 %v2219, 7
    %v2221 = vsub.s32 5, %v2220
    %v2222 = vrot.slane %v396, %v2221
    %v2223 = vmul.f32 %v1969, %v2098
    %v2224 = vmul.f32 %v1973, %v2102
    %v2225 = vmul.f32 %v1977, %v2106
    %v2226 = vmul.f32 %v1981, %v2110
    %v2227 = vmul.f32 %v1985, %v2114
    %v2228 = vmul.f32 %v1989, %v2118
    %v2229 = vmul.f32 %v1993, %v2122
    %v2230 = vmul.f32 %v1997, %v2126
    %v2231 = vmul.f32 %v2001, %v2130
    %v2232 = vmul.f32 %v2005, %v2134
    %v2233 = vmul.f32 %v2009, %v2138
    %v2234 = vmul.f32 %v2013, %v2142
    %v2235 = vmul.f32 %v2017, %v2146
    %v2236 = vmul.f32 %v2021, %v2150
    %v2237 = vmul.f32 %v2025, %v2154
    %v2238 = vmul.f32 %v2029, %v2158
    %v2239 = vmul.f32 %v2033, %v2162
    %v2240 = vmul.f32 %v2037, %v2166
    %v2241 = vmul.f32 %v2041, %v2170
    %v2242 = vmul.f32 %v2045, %v2174
    %v2243 = vmul.f32 %v2049, %v2178
    %v2244 = vmul.f32 %v2053, %v2182
    %v2245 = vmul.f32 %v2057, %v2186
    %v2246 = vmul.f32 %v2061, %v2190
    %v2247 = vmul.f32 %v2065, %v2194
    %v2248 = vmul.f32 %v2069, %v2198
    %v2249 = vmul.f32 %v2073, %v2202
    %v2250 = vmul.f32 %v2077, %v2206
    %v2251 = vmul.f32 %v2081, %v2210
    %v2252 = vmul.f32 %v2085, %v2214
    %v2253 = vmul.f32 %v2089, %v2218
    %v2254 = vmul.f32 %v2093, %v2222
    %v2255 = vadd.f32 %v1935, %v2223
    %v2256 = vadd.f32 %v1936, %v2224
    %v2257 = vadd.f32 %v1937, %v2225
    %v2258 = vadd.f32 %v1938, %v2226
    %v2259 = vadd.f32 %v1939, %v2227
    %v2260 = vadd.f32 %v1940, %v2228
    %v2261 = vadd.f32 %v1941, %v2229
    %v2262 = vadd.f32 %v1942, %v2230
    %v2263 = vadd.f32 %v1943, %v2231
    %v2264 = vadd.f32 %v1944, %v2232
    %v2265 = vadd.f32 %v1945, %v2233
    %v2266 = vadd.f32 %v1946, %v2234
    %v2267 = vadd.f32 %v1947, %v2235
    %v2268 = vadd.f32 %v1948, %v2236
    %v2269 = vadd.f32 %v1949, %v2237
    %v2270 = vadd.f32 %v1950, %v2238
    %v2271 = vadd.f32 %v1951, %v2239
    %v2272 = vadd.f32 %v1952, %v2240
    %v2273 = vadd.f32 %v1953, %v2241
    %v2274 = vadd.f32 %v1954, %v2242
    %v2275 = vadd.f32 %v1955, %v2243
    %v2276 = vadd.f32 %v1956, %v2244
    %v2277 = vadd.f32 %v1957, %v2245
    %v2278 = vadd.f32 %v1958, %v2246
    %v2279 = vadd.f32 %v1959, %v2247
    %v2280 = vadd.f32 %v1960, %v2248
    %v2281 = vadd.f32 %v1961, %v2249
    %v2282 = vadd.f32 %v1962, %v2250
    %v2283 = vadd.f32 %v1963, %v2251
    %v2284 = vadd.f32 %v1964, %v2252
    %v2285 = vadd.f32 %v1965, %v2253
    %v2286 = vadd.f32 %v1966, %v2254
    %2287 = vset.pattern.permute.xlu0 38
    %2288 = vperm.xlu0 %2287, %v32
    %v2289 = vpop.permute.xlu0 %2288
    %2291 = vset.pattern.permute.xlu0 38
    %2292 = vperm.xlu0 %2291, %v33
    %v2293 = vpop.permute.xlu0 %2292
    %2295 = vset.pattern.permute.xlu0 38
    %2296 = vperm.xlu0 %2295, %v34
    %v2297 = vpop.permute.xlu0 %2296
    %2299 = vset.pattern.permute.xlu0 38
    %2300 = vperm.xlu0 %2299, %v35
    %v2301 = vpop.permute.xlu0 %2300
    %2303 = vset.pattern.permute.xlu0 38
    %2304 = vperm.xlu0 %2303, %v36
    %v2305 = vpop.permute.xlu0 %2304
    %2307 = vset.pattern.permute.xlu0 38
    %2308 = vperm.xlu0 %2307, %v37
    %v2309 = vpop.permute.xlu0 %2308
    %2311 = vset.pattern.permute.xlu0 38
    %2312 = vperm.xlu0 %2311, %v38
    %v2313 = vpop.permute.xlu0 %2312
    %2315 = vset.pattern.permute.xlu0 38
    %2316 = vperm.xlu0 %2315, %v39
    %v2317 = vpop.permute.xlu0 %2316
    %2319 = vset.pattern.permute.xlu0 38
    %2320 = vperm.xlu0 %2319, %v40
    %v2321 = vpop.permute.xlu0 %2320
    %2323 = vset.pattern.permute.xlu0 38
    %2324 = vperm.xlu0 %2323, %v41
    %v2325 = vpop.permute.xlu0 %2324
    %2327 = vset.pattern.permute.xlu0 38
    %2328 = vperm.xlu0 %2327, %v42
    %v2329 = vpop.permute.xlu0 %2328
    %2331 = vset.pattern.permute.xlu0 38
    %2332 = vperm.xlu0 %2331, %v43
    %v2333 = vpop.permute.xlu0 %2332
    %2335 = vset.pattern.permute.xlu0 38
    %2336 = vperm.xlu0 %2335, %v44
    %v2337 = vpop.permute.xlu0 %2336
    %2339 = vset.pattern.permute.xlu0 38
    %2340 = vperm.xlu0 %2339, %v45
    %v2341 = vpop.permute.xlu0 %2340
    %2343 = vset.pattern.permute.xlu0 38
    %2344 = vperm.xlu0 %2343, %v46
    %v2345 = vpop.permute.xlu0 %2344
    %2347 = vset.pattern.permute.xlu0 38
    %2348 = vperm.xlu0 %2347, %v47
    %v2349 = vpop.permute.xlu0 %2348
    %2351 = vset.pattern.permute.xlu0 38
    %2352 = vperm.xlu0 %2351, %v48
    %v2353 = vpop.permute.xlu0 %2352
    %2355 = vset.pattern.permute.xlu0 38
    %2356 = vperm.xlu0 %2355, %v49
    %v2357 = vpop.permute.xlu0 %2356
    %2359 = vset.pattern.permute.xlu0 38
    %2360 = vperm.xlu0 %2359, %v50
    %v2361 = vpop.permute.xlu0 %2360
    %2363 = vset.pattern.permute.xlu0 38
    %2364 = vperm.xlu0 %2363, %v51
    %v2365 = vpop.permute.xlu0 %2364
    %2367 = vset.pattern.permute.xlu0 38
    %2368 = vperm.xlu0 %2367, %v52
    %v2369 = vpop.permute.xlu0 %2368
    %2371 = vset.pattern.permute.xlu0 38
    %2372 = vperm.xlu0 %2371, %v53
    %v2373 = vpop.permute.xlu0 %2372
    %2375 = vset.pattern.permute.xlu0 38
    %2376 = vperm.xlu0 %2375, %v54
    %v2377 = vpop.permute.xlu0 %2376
    %2379 = vset.pattern.permute.xlu0 38
    %2380 = vperm.xlu0 %2379, %v55
    %v2381 = vpop.permute.xlu0 %2380
    %2383 = vset.pattern.permute.xlu0 38
    %2384 = vperm.xlu0 %2383, %v56
    %v2385 = vpop.permute.xlu0 %2384
    %2387 = vset.pattern.permute.xlu0 38
    %2388 = vperm.xlu0 %2387, %v57
    %v2389 = vpop.permute.xlu0 %2388
    %2391 = vset.pattern.permute.xlu0 38
    %2392 = vperm.xlu0 %2391, %v58
    %v2393 = vpop.permute.xlu0 %2392
    %2395 = vset.pattern.permute.xlu0 38
    %2396 = vperm.xlu0 %2395, %v59
    %v2397 = vpop.permute.xlu0 %2396
    %2399 = vset.pattern.permute.xlu0 38
    %2400 = vperm.xlu0 %2399, %v60
    %v2401 = vpop.permute.xlu0 %2400
    %2403 = vset.pattern.permute.xlu0 38
    %2404 = vperm.xlu0 %2403, %v61
    %v2405 = vpop.permute.xlu0 %2404
    %2407 = vset.pattern.permute.xlu0 38
    %2408 = vperm.xlu0 %2407, %v62
    %v2409 = vpop.permute.xlu0 %2408
    %2411 = vset.pattern.permute.xlu0 38
    %2412 = vperm.xlu0 %2411, %v63
    %v2413 = vpop.permute.xlu0 %2412
    %v2415 = vlaneseq
    %v2416 = vshrl.u32 %v2415, 7
    %v2417 = vsub.s32 6, %v2416
    %v2418 = vrot.slane %v241, %v2417
    %v2419 = vlaneseq
    %v2420 = vshrl.u32 %v2419, 7
    %v2421 = vsub.s32 6, %v2420
    %v2422 = vrot.slane %v246, %v2421
    %v2423 = vlaneseq
    %v2424 = vshrl.u32 %v2423, 7
    %v2425 = vsub.s32 6, %v2424
    %v2426 = vrot.slane %v251, %v2425
    %v2427 = vlaneseq
    %v2428 = vshrl.u32 %v2427, 7
    %v2429 = vsub.s32 6, %v2428
    %v2430 = vrot.slane %v256, %v2429
    %v2431 = vlaneseq
    %v2432 = vshrl.u32 %v2431, 7
    %v2433 = vsub.s32 6, %v2432
    %v2434 = vrot.slane %v261, %v2433
    %v2435 = vlaneseq
    %v2436 = vshrl.u32 %v2435, 7
    %v2437 = vsub.s32 6, %v2436
    %v2438 = vrot.slane %v266, %v2437
    %v2439 = vlaneseq
    %v2440 = vshrl.u32 %v2439, 7
    %v2441 = vsub.s32 6, %v2440
    %v2442 = vrot.slane %v271, %v2441
    %v2443 = vlaneseq
    %v2444 = vshrl.u32 %v2443, 7
    %v2445 = vsub.s32 6, %v2444
    %v2446 = vrot.slane %v276, %v2445
    %v2447 = vlaneseq
    %v2448 = vshrl.u32 %v2447, 7
    %v2449 = vsub.s32 6, %v2448
    %v2450 = vrot.slane %v281, %v2449
    %v2451 = vlaneseq
    %v2452 = vshrl.u32 %v2451, 7
    %v2453 = vsub.s32 6, %v2452
    %v2454 = vrot.slane %v286, %v2453
    %v2455 = vlaneseq
    %v2456 = vshrl.u32 %v2455, 7
    %v2457 = vsub.s32 6, %v2456
    %v2458 = vrot.slane %v291, %v2457
    %v2459 = vlaneseq
    %v2460 = vshrl.u32 %v2459, 7
    %v2461 = vsub.s32 6, %v2460
    %v2462 = vrot.slane %v296, %v2461
    %v2463 = vlaneseq
    %v2464 = vshrl.u32 %v2463, 7
    %v2465 = vsub.s32 6, %v2464
    %v2466 = vrot.slane %v301, %v2465
    %v2467 = vlaneseq
    %v2468 = vshrl.u32 %v2467, 7
    %v2469 = vsub.s32 6, %v2468
    %v2470 = vrot.slane %v306, %v2469
    %v2471 = vlaneseq
    %v2472 = vshrl.u32 %v2471, 7
    %v2473 = vsub.s32 6, %v2472
    %v2474 = vrot.slane %v311, %v2473
    %v2475 = vlaneseq
    %v2476 = vshrl.u32 %v2475, 7
    %v2477 = vsub.s32 6, %v2476
    %v2478 = vrot.slane %v316, %v2477
    %v2479 = vlaneseq
    %v2480 = vshrl.u32 %v2479, 7
    %v2481 = vsub.s32 6, %v2480
    %v2482 = vrot.slane %v321, %v2481
    %v2483 = vlaneseq
    %v2484 = vshrl.u32 %v2483, 7
    %v2485 = vsub.s32 6, %v2484
    %v2486 = vrot.slane %v326, %v2485
    %v2487 = vlaneseq
    %v2488 = vshrl.u32 %v2487, 7
    %v2489 = vsub.s32 6, %v2488
    %v2490 = vrot.slane %v331, %v2489
    %v2491 = vlaneseq
    %v2492 = vshrl.u32 %v2491, 7
    %v2493 = vsub.s32 6, %v2492
    %v2494 = vrot.slane %v336, %v2493
    %v2495 = vlaneseq
    %v2496 = vshrl.u32 %v2495, 7
    %v2497 = vsub.s32 6, %v2496
    %v2498 = vrot.slane %v341, %v2497
    %v2499 = vlaneseq
    %v2500 = vshrl.u32 %v2499, 7
    %v2501 = vsub.s32 6, %v2500
    %v2502 = vrot.slane %v346, %v2501
    %v2503 = vlaneseq
    %v2504 = vshrl.u32 %v2503, 7
    %v2505 = vsub.s32 6, %v2504
    %v2506 = vrot.slane %v351, %v2505
    %v2507 = vlaneseq
    %v2508 = vshrl.u32 %v2507, 7
    %v2509 = vsub.s32 6, %v2508
    %v2510 = vrot.slane %v356, %v2509
    %v2511 = vlaneseq
    %v2512 = vshrl.u32 %v2511, 7
    %v2513 = vsub.s32 6, %v2512
    %v2514 = vrot.slane %v361, %v2513
    %v2515 = vlaneseq
    %v2516 = vshrl.u32 %v2515, 7
    %v2517 = vsub.s32 6, %v2516
    %v2518 = vrot.slane %v366, %v2517
    %v2519 = vlaneseq
    %v2520 = vshrl.u32 %v2519, 7
    %v2521 = vsub.s32 6, %v2520
    %v2522 = vrot.slane %v371, %v2521
    %v2523 = vlaneseq
    %v2524 = vshrl.u32 %v2523, 7
    %v2525 = vsub.s32 6, %v2524
    %v2526 = vrot.slane %v376, %v2525
    %v2527 = vlaneseq
    %v2528 = vshrl.u32 %v2527, 7
    %v2529 = vsub.s32 6, %v2528
    %v2530 = vrot.slane %v381, %v2529
    %v2531 = vlaneseq
    %v2532 = vshrl.u32 %v2531, 7
    %v2533 = vsub.s32 6, %v2532
    %v2534 = vrot.slane %v386, %v2533
    %v2535 = vlaneseq
    %v2536 = vshrl.u32 %v2535, 7
    %v2537 = vsub.s32 6, %v2536
    %v2538 = vrot.slane %v391, %v2537
    %v2539 = vlaneseq
    %v2540 = vshrl.u32 %v2539, 7
    %v2541 = vsub.s32 6, %v2540
    %v2542 = vrot.slane %v396, %v2541
    %v2543 = vmul.f32 %v2289, %v2418
    %v2544 = vmul.f32 %v2293, %v2422
    %v2545 = vmul.f32 %v2297, %v2426
    %v2546 = vmul.f32 %v2301, %v2430
    %v2547 = vmul.f32 %v2305, %v2434
    %v2548 = vmul.f32 %v2309, %v2438
    %v2549 = vmul.f32 %v2313, %v2442
    %v2550 = vmul.f32 %v2317, %v2446
    %v2551 = vmul.f32 %v2321, %v2450
    %v2552 = vmul.f32 %v2325, %v2454
    %v2553 = vmul.f32 %v2329, %v2458
    %v2554 = vmul.f32 %v2333, %v2462
    %v2555 = vmul.f32 %v2337, %v2466
    %v2556 = vmul.f32 %v2341, %v2470
    %v2557 = vmul.f32 %v2345, %v2474
    %v2558 = vmul.f32 %v2349, %v2478
    %v2559 = vmul.f32 %v2353, %v2482
    %v2560 = vmul.f32 %v2357, %v2486
    %v2561 = vmul.f32 %v2361, %v2490
    %v2562 = vmul.f32 %v2365, %v2494
    %v2563 = vmul.f32 %v2369, %v2498
    %v2564 = vmul.f32 %v2373, %v2502
    %v2565 = vmul.f32 %v2377, %v2506
    %v2566 = vmul.f32 %v2381, %v2510
    %v2567 = vmul.f32 %v2385, %v2514
    %v2568 = vmul.f32 %v2389, %v2518
    %v2569 = vmul.f32 %v2393, %v2522
    %v2570 = vmul.f32 %v2397, %v2526
    %v2571 = vmul.f32 %v2401, %v2530
    %v2572 = vmul.f32 %v2405, %v2534
    %v2573 = vmul.f32 %v2409, %v2538
    %v2574 = vmul.f32 %v2413, %v2542
    %v2575 = vadd.f32 %v2255, %v2543
    %v2576 = vadd.f32 %v2256, %v2544
    %v2577 = vadd.f32 %v2257, %v2545
    %v2578 = vadd.f32 %v2258, %v2546
    %v2579 = vadd.f32 %v2259, %v2547
    %v2580 = vadd.f32 %v2260, %v2548
    %v2581 = vadd.f32 %v2261, %v2549
    %v2582 = vadd.f32 %v2262, %v2550
    %v2583 = vadd.f32 %v2263, %v2551
    %v2584 = vadd.f32 %v2264, %v2552
    %v2585 = vadd.f32 %v2265, %v2553
    %v2586 = vadd.f32 %v2266, %v2554
    %v2587 = vadd.f32 %v2267, %v2555
    %v2588 = vadd.f32 %v2268, %v2556
    %v2589 = vadd.f32 %v2269, %v2557
    %v2590 = vadd.f32 %v2270, %v2558
    %v2591 = vadd.f32 %v2271, %v2559
    %v2592 = vadd.f32 %v2272, %v2560
    %v2593 = vadd.f32 %v2273, %v2561
    %v2594 = vadd.f32 %v2274, %v2562
    %v2595 = vadd.f32 %v2275, %v2563
    %v2596 = vadd.f32 %v2276, %v2564
    %v2597 = vadd.f32 %v2277, %v2565
    %v2598 = vadd.f32 %v2278, %v2566
    %v2599 = vadd.f32 %v2279, %v2567
    %v2600 = vadd.f32 %v2280, %v2568
    %v2601 = vadd.f32 %v2281, %v2569
    %v2602 = vadd.f32 %v2282, %v2570
    %v2603 = vadd.f32 %v2283, %v2571
    %v2604 = vadd.f32 %v2284, %v2572
    %v2605 = vadd.f32 %v2285, %v2573
    %v2606 = vadd.f32 %v2286, %v2574
    %2607 = vset.pattern.permute.xlu0 39
    %2608 = vperm.xlu0 %2607, %v32
    %v2609 = vpop.permute.xlu0 %2608
    %2611 = vset.pattern.permute.xlu0 39
    %2612 = vperm.xlu0 %2611, %v33
    %v2613 = vpop.permute.xlu0 %2612
    %2615 = vset.pattern.permute.xlu0 39
    %2616 = vperm.xlu0 %2615, %v34
    %v2617 = vpop.permute.xlu0 %2616
    %2619 = vset.pattern.permute.xlu0 39
    %2620 = vperm.xlu0 %2619, %v35
    %v2621 = vpop.permute.xlu0 %2620
    %2623 = vset.pattern.permute.xlu0 39
    %2624 = vperm.xlu0 %2623, %v36
    %v2625 = vpop.permute.xlu0 %2624
    %2627 = vset.pattern.permute.xlu0 39
    %2628 = vperm.xlu0 %2627, %v37
    %v2629 = vpop.permute.xlu0 %2628
    %2631 = vset.pattern.permute.xlu0 39
    %2632 = vperm.xlu0 %2631, %v38
    %v2633 = vpop.permute.xlu0 %2632
    %2635 = vset.pattern.permute.xlu0 39
    %2636 = vperm.xlu0 %2635, %v39
    %v2637 = vpop.permute.xlu0 %2636
    %2639 = vset.pattern.permute.xlu0 39
    %2640 = vperm.xlu0 %2639, %v40
    %v2641 = vpop.permute.xlu0 %2640
    %2643 = vset.pattern.permute.xlu0 39
    %2644 = vperm.xlu0 %2643, %v41
    %v2645 = vpop.permute.xlu0 %2644
    %2647 = vset.pattern.permute.xlu0 39
    %2648 = vperm.xlu0 %2647, %v42
    %v2649 = vpop.permute.xlu0 %2648
    %2651 = vset.pattern.permute.xlu0 39
    %2652 = vperm.xlu0 %2651, %v43
    %v2653 = vpop.permute.xlu0 %2652
    %2655 = vset.pattern.permute.xlu0 39
    %2656 = vperm.xlu0 %2655, %v44
    %v2657 = vpop.permute.xlu0 %2656
    %2659 = vset.pattern.permute.xlu0 39
    %2660 = vperm.xlu0 %2659, %v45
    %v2661 = vpop.permute.xlu0 %2660
    %2663 = vset.pattern.permute.xlu0 39
    %2664 = vperm.xlu0 %2663, %v46
    %v2665 = vpop.permute.xlu0 %2664
    %2667 = vset.pattern.permute.xlu0 39
    %2668 = vperm.xlu0 %2667, %v47
    %v2669 = vpop.permute.xlu0 %2668
    %2671 = vset.pattern.permute.xlu0 39
    %2672 = vperm.xlu0 %2671, %v48
    %v2673 = vpop.permute.xlu0 %2672
    %2675 = vset.pattern.permute.xlu0 39
    %2676 = vperm.xlu0 %2675, %v49
    %v2677 = vpop.permute.xlu0 %2676
    %2679 = vset.pattern.permute.xlu0 39
    %2680 = vperm.xlu0 %2679, %v50
    %v2681 = vpop.permute.xlu0 %2680
    %2683 = vset.pattern.permute.xlu0 39
    %2684 = vperm.xlu0 %2683, %v51
    %v2685 = vpop.permute.xlu0 %2684
    %2687 = vset.pattern.permute.xlu0 39
    %2688 = vperm.xlu0 %2687, %v52
    %v2689 = vpop.permute.xlu0 %2688
    %2691 = vset.pattern.permute.xlu0 39
    %2692 = vperm.xlu0 %2691, %v53
    %v2693 = vpop.permute.xlu0 %2692
    %2695 = vset.pattern.permute.xlu0 39
    %2696 = vperm.xlu0 %2695, %v54
    %v2697 = vpop.permute.xlu0 %2696
    %2699 = vset.pattern.permute.xlu0 39
    %2700 = vperm.xlu0 %2699, %v55
    %v2701 = vpop.permute.xlu0 %2700
    %2703 = vset.pattern.permute.xlu0 39
    %2704 = vperm.xlu0 %2703, %v56
    %v2705 = vpop.permute.xlu0 %2704
    %2707 = vset.pattern.permute.xlu0 39
    %2708 = vperm.xlu0 %2707, %v57
    %v2709 = vpop.permute.xlu0 %2708
    %2711 = vset.pattern.permute.xlu0 39
    %2712 = vperm.xlu0 %2711, %v58
    %v2713 = vpop.permute.xlu0 %2712
    %2715 = vset.pattern.permute.xlu0 39
    %2716 = vperm.xlu0 %2715, %v59
    %v2717 = vpop.permute.xlu0 %2716
    %2719 = vset.pattern.permute.xlu0 39
    %2720 = vperm.xlu0 %2719, %v60
    %v2721 = vpop.permute.xlu0 %2720
    %2723 = vset.pattern.permute.xlu0 39
    %2724 = vperm.xlu0 %2723, %v61
    %v2725 = vpop.permute.xlu0 %2724
    %2727 = vset.pattern.permute.xlu0 39
    %2728 = vperm.xlu0 %2727, %v62
    %v2729 = vpop.permute.xlu0 %2728
    %2731 = vset.pattern.permute.xlu0 39
    %2732 = vperm.xlu0 %2731, %v63
    %v2733 = vpop.permute.xlu0 %2732
    %v2735 = vlaneseq
    %v2736 = vshrl.u32 %v2735, 7
    %v2737 = vsub.s32 7, %v2736
    %v2738 = vrot.slane %v241, %v2737
    %v2739 = vlaneseq
    %v2740 = vshrl.u32 %v2739, 7
    %v2741 = vsub.s32 7, %v2740
    %v2742 = vrot.slane %v246, %v2741
    %v2743 = vlaneseq
    %v2744 = vshrl.u32 %v2743, 7
    %v2745 = vsub.s32 7, %v2744
    %v2746 = vrot.slane %v251, %v2745
    %v2747 = vlaneseq
    %v2748 = vshrl.u32 %v2747, 7
    %v2749 = vsub.s32 7, %v2748
    %v2750 = vrot.slane %v256, %v2749
    %v2751 = vlaneseq
    %v2752 = vshrl.u32 %v2751, 7
    %v2753 = vsub.s32 7, %v2752
    %v2754 = vrot.slane %v261, %v2753
    %v2755 = vlaneseq
    %v2756 = vshrl.u32 %v2755, 7
    %v2757 = vsub.s32 7, %v2756
    %v2758 = vrot.slane %v266, %v2757
    %v2759 = vlaneseq
    %v2760 = vshrl.u32 %v2759, 7
    %v2761 = vsub.s32 7, %v2760
    %v2762 = vrot.slane %v271, %v2761
    %v2763 = vlaneseq
    %v2764 = vshrl.u32 %v2763, 7
    %v2765 = vsub.s32 7, %v2764
    %v2766 = vrot.slane %v276, %v2765
    %v2767 = vlaneseq
    %v2768 = vshrl.u32 %v2767, 7
    %v2769 = vsub.s32 7, %v2768
    %v2770 = vrot.slane %v281, %v2769
    %v2771 = vlaneseq
    %v2772 = vshrl.u32 %v2771, 7
    %v2773 = vsub.s32 7, %v2772
    %v2774 = vrot.slane %v286, %v2773
    %v2775 = vlaneseq
    %v2776 = vshrl.u32 %v2775, 7
    %v2777 = vsub.s32 7, %v2776
    %v2778 = vrot.slane %v291, %v2777
    %v2779 = vlaneseq
    %v2780 = vshrl.u32 %v2779, 7
    %v2781 = vsub.s32 7, %v2780
    %v2782 = vrot.slane %v296, %v2781
    %v2783 = vlaneseq
    %v2784 = vshrl.u32 %v2783, 7
    %v2785 = vsub.s32 7, %v2784
    %v2786 = vrot.slane %v301, %v2785
    %v2787 = vlaneseq
    %v2788 = vshrl.u32 %v2787, 7
    %v2789 = vsub.s32 7, %v2788
    %v2790 = vrot.slane %v306, %v2789
    %v2791 = vlaneseq
    %v2792 = vshrl.u32 %v2791, 7
    %v2793 = vsub.s32 7, %v2792
    %v2794 = vrot.slane %v311, %v2793
    %v2795 = vlaneseq
    %v2796 = vshrl.u32 %v2795, 7
    %v2797 = vsub.s32 7, %v2796
    %v2798 = vrot.slane %v316, %v2797
    %v2799 = vlaneseq
    %v2800 = vshrl.u32 %v2799, 7
    %v2801 = vsub.s32 7, %v2800
    %v2802 = vrot.slane %v321, %v2801
    %v2803 = vlaneseq
    %v2804 = vshrl.u32 %v2803, 7
    %v2805 = vsub.s32 7, %v2804
    %v2806 = vrot.slane %v326, %v2805
    %v2807 = vlaneseq
    %v2808 = vshrl.u32 %v2807, 7
    %v2809 = vsub.s32 7, %v2808
    %v2810 = vrot.slane %v331, %v2809
    %v2811 = vlaneseq
    %v2812 = vshrl.u32 %v2811, 7
    %v2813 = vsub.s32 7, %v2812
    %v2814 = vrot.slane %v336, %v2813
    %v2815 = vlaneseq
    %v2816 = vshrl.u32 %v2815, 7
    %v2817 = vsub.s32 7, %v2816
    %v2818 = vrot.slane %v341, %v2817
    %v2819 = vlaneseq
    %v2820 = vshrl.u32 %v2819, 7
    %v2821 = vsub.s32 7, %v2820
    %v2822 = vrot.slane %v346, %v2821
    %v2823 = vlaneseq
    %v2824 = vshrl.u32 %v2823, 7
    %v2825 = vsub.s32 7, %v2824
    %v2826 = vrot.slane %v351, %v2825
    %v2827 = vlaneseq
    %v2828 = vshrl.u32 %v2827, 7
    %v2829 = vsub.s32 7, %v2828
    %v2830 = vrot.slane %v356, %v2829
    %v2831 = vlaneseq
    %v2832 = vshrl.u32 %v2831, 7
    %v2833 = vsub.s32 7, %v2832
    %v2834 = vrot.slane %v361, %v2833
    %v2835 = vlaneseq
    %v2836 = vshrl.u32 %v2835, 7
    %v2837 = vsub.s32 7, %v2836
    %v2838 = vrot.slane %v366, %v2837
    %v2839 = vlaneseq
    %v2840 = vshrl.u32 %v2839, 7
    %v2841 = vsub.s32 7, %v2840
    %v2842 = vrot.slane %v371, %v2841
    %v2843 = vlaneseq
    %v2844 = vshrl.u32 %v2843, 7
    %v2845 = vsub.s32 7, %v2844
    %v2846 = vrot.slane %v376, %v2845
    %v2847 = vlaneseq
    %v2848 = vshrl.u32 %v2847, 7
    %v2849 = vsub.s32 7, %v2848
    %v2850 = vrot.slane %v381, %v2849
    %v2851 = vlaneseq
    %v2852 = vshrl.u32 %v2851, 7
    %v2853 = vsub.s32 7, %v2852
    %v2854 = vrot.slane %v386, %v2853
    %v2855 = vlaneseq
    %v2856 = vshrl.u32 %v2855, 7
    %v2857 = vsub.s32 7, %v2856
    %v2858 = vrot.slane %v391, %v2857
    %v2859 = vlaneseq
    %v2860 = vshrl.u32 %v2859, 7
    %v2861 = vsub.s32 7, %v2860
    %v2862 = vrot.slane %v396, %v2861
    %v2863 = vmul.f32 %v2609, %v2738
    %v2864 = vmul.f32 %v2613, %v2742
    %v2865 = vmul.f32 %v2617, %v2746
    %v2866 = vmul.f32 %v2621, %v2750
    %v2867 = vmul.f32 %v2625, %v2754
    %v2868 = vmul.f32 %v2629, %v2758
    %v2869 = vmul.f32 %v2633, %v2762
    %v2870 = vmul.f32 %v2637, %v2766
    %v2871 = vmul.f32 %v2641, %v2770
    %v2872 = vmul.f32 %v2645, %v2774
    %v2873 = vmul.f32 %v2649, %v2778
    %v2874 = vmul.f32 %v2653, %v2782
    %v2875 = vmul.f32 %v2657, %v2786
    %v2876 = vmul.f32 %v2661, %v2790
    %v2877 = vmul.f32 %v2665, %v2794
    %v2878 = vmul.f32 %v2669, %v2798
    %v2879 = vmul.f32 %v2673, %v2802
    %v2880 = vmul.f32 %v2677, %v2806
    %v2881 = vmul.f32 %v2681, %v2810
    %v2882 = vmul.f32 %v2685, %v2814
    %v2883 = vmul.f32 %v2689, %v2818
    %v2884 = vmul.f32 %v2693, %v2822
    %v2885 = vmul.f32 %v2697, %v2826
    %v2886 = vmul.f32 %v2701, %v2830
    %v2887 = vmul.f32 %v2705, %v2834
    %v2888 = vmul.f32 %v2709, %v2838
    %v2889 = vmul.f32 %v2713, %v2842
    %v2890 = vmul.f32 %v2717, %v2846
    %v2891 = vmul.f32 %v2721, %v2850
    %v2892 = vmul.f32 %v2725, %v2854
    %v2893 = vmul.f32 %v2729, %v2858
    %v2894 = vmul.f32 %v2733, %v2862
    %v2895 = vadd.f32 %v2575, %v2863
    %v2896 = vadd.f32 %v2576, %v2864
    %v2897 = vadd.f32 %v2577, %v2865
    %v2898 = vadd.f32 %v2578, %v2866
    %v2899 = vadd.f32 %v2579, %v2867
    %v2900 = vadd.f32 %v2580, %v2868
    %v2901 = vadd.f32 %v2581, %v2869
    %v2902 = vadd.f32 %v2582, %v2870
    %v2903 = vadd.f32 %v2583, %v2871
    %v2904 = vadd.f32 %v2584, %v2872
    %v2905 = vadd.f32 %v2585, %v2873
    %v2906 = vadd.f32 %v2586, %v2874
    %v2907 = vadd.f32 %v2587, %v2875
    %v2908 = vadd.f32 %v2588, %v2876
    %v2909 = vadd.f32 %v2589, %v2877
    %v2910 = vadd.f32 %v2590, %v2878
    %v2911 = vadd.f32 %v2591, %v2879
    %v2912 = vadd.f32 %v2592, %v2880
    %v2913 = vadd.f32 %v2593, %v2881
    %v2914 = vadd.f32 %v2594, %v2882
    %v2915 = vadd.f32 %v2595, %v2883
    %v2916 = vadd.f32 %v2596, %v2884
    %v2917 = vadd.f32 %v2597, %v2885
    %v2918 = vadd.f32 %v2598, %v2886
    %v2919 = vadd.f32 %v2599, %v2887
    %v2920 = vadd.f32 %v2600, %v2888
    %v2921 = vadd.f32 %v2601, %v2889
    %v2922 = vadd.f32 %v2602, %v2890
    %v2923 = vadd.f32 %v2603, %v2891
    %v2924 = vadd.f32 %v2604, %v2892
    %v2925 = vadd.f32 %v2605, %v2893
    %v2926 = vadd.f32 %v2606, %v2894
    %v2928 = vlaneseq
    %v2929 = vshrl.u32 %v2928, 7
    %v2930 = vsub.s32 0, %v2929
    %v2931 = vrot.slane %v64, %v2930
    %v2933 = vadd.f32 %v2895, %v2931
    %v2934 = vadd.f32 %v2896, %v2931
    %v2935 = vadd.f32 %v2897, %v2931
    %v2936 = vadd.f32 %v2898, %v2931
    %v2937 = vadd.f32 %v2899, %v2931
    %v2938 = vadd.f32 %v2900, %v2931
    %v2939 = vadd.f32 %v2901, %v2931
    %v2940 = vadd.f32 %v2902, %v2931
    %v2941 = vadd.f32 %v2903, %v2931
    %v2942 = vadd.f32 %v2904, %v2931
    %v2943 = vadd.f32 %v2905, %v2931
    %v2944 = vadd.f32 %v2906, %v2931
    %v2945 = vadd.f32 %v2907, %v2931
    %v2946 = vadd.f32 %v2908, %v2931
    %v2947 = vadd.f32 %v2909, %v2931
    %v2948 = vadd.f32 %v2910, %v2931
    %v2949 = vadd.f32 %v2911, %v2931
    %v2950 = vadd.f32 %v2912, %v2931
    %v2951 = vadd.f32 %v2913, %v2931
    %v2952 = vadd.f32 %v2914, %v2931
    %v2953 = vadd.f32 %v2915, %v2931
    %v2954 = vadd.f32 %v2916, %v2931
    %v2955 = vadd.f32 %v2917, %v2931
    %v2956 = vadd.f32 %v2918, %v2931
    %v2957 = vadd.f32 %v2919, %v2931
    %v2958 = vadd.f32 %v2920, %v2931
    %v2959 = vadd.f32 %v2921, %v2931
    %v2960 = vadd.f32 %v2922, %v2931
    %v2961 = vadd.f32 %v2923, %v2931
    %v2962 = vadd.f32 %v2924, %v2931
    %v2963 = vadd.f32 %v2925, %v2931
    %v2964 = vadd.f32 %v2926, %v2931
    %v2965 = vtanh.pop %v2933
    %v2966 = vtanh.pop %v2934
    %v2967 = vtanh.pop %v2935
    %v2968 = vtanh.pop %v2936
    %v2969 = vtanh.pop %v2937
    %v2970 = vtanh.pop %v2938
    %v2971 = vtanh.pop %v2939
    %v2972 = vtanh.pop %v2940
    %v2973 = vtanh.pop %v2941
    %v2974 = vtanh.pop %v2942
    %v2975 = vtanh.pop %v2943
    %v2976 = vtanh.pop %v2944
    %v2977 = vtanh.pop %v2945
    %v2978 = vtanh.pop %v2946
    %v2979 = vtanh.pop %v2947
    %v2980 = vtanh.pop %v2948
    %v2981 = vtanh.pop %v2949
    %v2982 = vtanh.pop %v2950
    %v2983 = vtanh.pop %v2951
    %v2984 = vtanh.pop %v2952
    %v2985 = vtanh.pop %v2953
    %v2986 = vtanh.pop %v2954
    %v2987 = vtanh.pop %v2955
    %v2988 = vtanh.pop %v2956
    %v2989 = vtanh.pop %v2957
    %v2990 = vtanh.pop %v2958
    %v2991 = vtanh.pop %v2959
    %v2992 = vtanh.pop %v2960
    %v2993 = vtanh.pop %v2961
    %v2994 = vtanh.pop %v2962
    %v2995 = vtanh.pop %v2963
    %v2996 = vtanh.pop %v2964
    %2997 = vrot.lane.b32.xlu0 %v2931, 64
    %v2998 = vpop.permute.xlu0 %2997
    %vm3000 = vcmask 523264
    %v3002 = vsel %vm3000, %v2965, 0
    %v3005 = vsel %vm3000, %v2966, 0
    %v3008 = vsel %vm3000, %v2967, 0
    %v3011 = vsel %vm3000, %v2968, 0
    %v3014 = vsel %vm3000, %v2969, 0
    %v3017 = vsel %vm3000, %v2970, 0
    %v3020 = vsel %vm3000, %v2971, 0
    %v3023 = vsel %vm3000, %v2972, 0
    %v3026 = vsel %vm3000, %v2973, 0
    %v3029 = vsel %vm3000, %v2974, 0
    %v3032 = vsel %vm3000, %v2975, 0
    %v3035 = vsel %vm3000, %v2976, 0
    %v3038 = vsel %vm3000, %v2977, 0
    %v3041 = vsel %vm3000, %v2978, 0
    %v3044 = vsel %vm3000, %v2979, 0
    %v3047 = vsel %vm3000, %v2980, 0
    %v3050 = vsel %vm3000, %v2981, 0
    %v3053 = vsel %vm3000, %v2982, 0
    %v3056 = vsel %vm3000, %v2983, 0
    %v3059 = vsel %vm3000, %v2984, 0
    %v3062 = vsel %vm3000, %v2985, 0
    %v3065 = vsel %vm3000, %v2986, 0
    %v3068 = vsel %vm3000, %v2987, 0
    %v3071 = vsel %vm3000, %v2988, 0
    %v3074 = vsel %vm3000, %v2989, 0
    %v3077 = vsel %vm3000, %v2990, 0
    %v3080 = vsel %vm3000, %v2991, 0
    %v3083 = vsel %vm3000, %v2992, 0
    %v3086 = vsel %vm3000, %v2993, 0
    %v3089 = vsel %vm3000, %v2994, 0
    %v3092 = vsel %vm3000, %v2995, 0
    %v3095 = vsel %vm3000, %v2996, 0
    %3097 = vmatprep.subr.mxu0 0.0
    %3098 = vmatpush1.msra.mxu0 %v69
    %3099 = vmatprep.subr.mxu0 0.0
    %3100 = vmatpush1.msra.mxu0 %v70
    %3101 = vmatprep.subr.mxu0 0.0
    %3102 = vmatpush1.msra.mxu0 %v71
    %3103 = vmatprep.subr.mxu0 0.0
    %3104 = vmatpush1.msra.mxu0 %v72
    %3105 = vmatprep.subr.mxu0 0.0
    %3106 = vmatpush1.msra.mxu0 %v73
    %3107 = vmatprep.subr.mxu0 0.0
    %3108 = vmatpush1.msra.mxu0 %v74
    %3109 = vmatprep.subr.mxu0 0.0
    %3110 = vmatpush1.msra.mxu0 %v75
    %3111 = vmatprep.subr.mxu0 0.0
    %3112 = vmatpush1.msra.mxu0 %v76
    %3113 = vmatprep.subr.mxu0 0.0
    %3114 = vmatpush1.msra.mxu0 0.0
    %3115 = vmatprep.subr.mxu0 0.0
    %3116 = vmatpush1.msra.mxu0 0.0
    %3117 = vmatprep.subr.mxu0 0.0
    %3118 = vmatpush1.msra.mxu0 0.0
    %3119 = vmatprep.subr.mxu0 0.0
    %3120 = vmatpush1.msra.mxu0 0.0
    %3121 = vmatprep.subr.mxu0 0.0
    %3122 = vmatpush1.msra.mxu0 0.0
    %3123 = vmatprep.subr.mxu0 0.0
    %3124 = vmatpush1.msra.mxu0 0.0
    %3125 = vmatprep.subr.mxu0 0.0
    %3126 = vmatpush1.msra.mxu0 0.0
    %3127 = vmatprep.subr.mxu0 0.0
    %3128 = vmatpush1.msra.mxu0 0.0
    %3129 = vmatprep.subr.mxu0 0.0
    %3130 = vmatpush1.msra.mxu0 0.0
    %3131 = vmatprep.subr.mxu0 0.0
    %3132 = vmatpush1.msra.mxu0 0.0
    %3133 = vmatprep.subr.mxu0 0.0
    %3134 = vmatpush1.msra.mxu0 0.0
    %3135 = vmatprep.subr.mxu0 0.0
    %3136 = vmatpush1.msra.mxu0 0.0
    %3137 = vmatprep.subr.mxu0 0.0
    %3138 = vmatpush1.msra.mxu0 0.0
    %3139 = vmatprep.subr.mxu0 0.0
    %3140 = vmatpush1.msra.mxu0 0.0
    %3141 = vmatprep.subr.mxu0 0.0
    %3142 = vmatpush1.msra.mxu0 0.0
    %3143 = vmatprep.subr.mxu0 0.0
    %3144 = vmatpush1.msra.mxu0 0.0
    %3145 = vmatprep.subr.mxu0 0.0
    %3146 = vmatpush1.msra.mxu0 0.0
    %3147 = vmatprep.subr.mxu0 0.0
    %3148 = vmatpush1.msra.mxu0 0.0
    %3149 = vmatprep.subr.mxu0 0.0
    %3150 = vmatpush1.msra.mxu0 0.0
    %3151 = vmatprep.subr.mxu0 0.0
    %3152 = vmatpush1.msra.mxu0 0.0
    %3153 = vmatprep.subr.mxu0 0.0
    %3154 = vmatpush1.msra.mxu0 0.0
    %3155 = vmatprep.subr.mxu0 0.0
    %3156 = vmatpush1.msra.mxu0 0.0
    %3157 = vmatprep.subr.mxu0 0.0
    %3158 = vmatpush1.msra.mxu0 0.0
    %3159 = vmatprep.subr.mxu0 0.0
    %3160 = vmatpush1.msra.mxu0 0.0
    %3161 = vmatprep.mubr.f32.mxu0 0.0
    %3162 = vmatmul.mubr.f32.gmra.mrb[0].mxu0 %v3002
    %v3163 = vpop.f32.mrb[0].mxu0
    %v3164 = vadd.f32 %v2998, %v3163
    %v3165 = vpop.f32.mrb[0].mxu0
    %3166 = vmatprep.mubr.f32.mxu0 0.0
    %3167 = vmatmul.mubr.f32.gmra.mrb[0].mxu0 %v3005
    %v3168 = vpop.f32.mrb[0].mxu0
    %v3169 = vadd.f32 %v2998, %v3168
    %v3170 = vpop.f32.mrb[0].mxu0
    %3171 = vmatprep.mubr.f32.mxu0 0.0
    %3172 = vmatmul.mubr.f32.gmra.mrb[0].mxu0 %v3008
    %v3173 = vpop.f32.mrb[0].mxu0
    %v3174 = vadd.f32 %v2998, %v3173
    %v3175 = vpop.f32.mrb[0].mxu0
    %3176 = vmatprep.mubr.f32.mxu0 0.0
    %3177 = vmatmul.mubr.f32.gmra.mrb[0].mxu0 %v3011
    %v3178 = vpop.f32.mrb[0].mxu0
    %v3179 = vadd.f32 %v2998, %v3178
    %v3180 = vpop.f32.mrb[0].mxu0
    %3181 = vmatprep.mubr.f32.mxu0 0.0
    %3182 = vmatmul.mubr.f32.gmra.mrb[0].mxu0 %v3014
    %v3183 = vpop.f32.mrb[0].mxu0
    %v3184 = vadd.f32 %v2998, %v3183
    %v3185 = vpop.f32.mrb[0].mxu0
    %3186 = vmatprep.mubr.f32.mxu0 0.0
    %3187 = vmatmul.mubr.f32.gmra.mrb[0].mxu0 %v3017
    %v3188 = vpop.f32.mrb[0].mxu0
    %v3189 = vadd.f32 %v2998, %v3188
    %v3190 = vpop.f32.mrb[0].mxu0
    %3191 = vmatprep.mubr.f32.mxu0 0.0
    %3192 = vmatmul.mubr.f32.gmra.mrb[0].mxu0 %v3020
    %v3193 = vpop.f32.mrb[0].mxu0
    %v3194 = vadd.f32 %v2998, %v3193
    %v3195 = vpop.f32.mrb[0].mxu0
    %3196 = vmatprep.mubr.f32.mxu0 0.0
    %3197 = vmatmul.mubr.f32.gmra.mrb[0].mxu0 %v3023
    %v3198 = vpop.f32.mrb[0].mxu0
    %v3199 = vadd.f32 %v2998, %v3198
    %v3200 = vpop.f32.mrb[0].mxu0
    %3201 = vmatprep.mubr.f32.mxu0 0.0
    %3202 = vmatmul.mubr.f32.gmra.mrb[0].mxu0 %v3026
    %v3203 = vpop.f32.mrb[0].mxu0
    %v3204 = vadd.f32 %v2998, %v3203
    %v3205 = vpop.f32.mrb[0].mxu0
    %3206 = vmatprep.mubr.f32.mxu0 0.0
    %3207 = vmatmul.mubr.f32.gmra.mrb[0].mxu0 %v3029
    %v3208 = vpop.f32.mrb[0].mxu0
    %v3209 = vadd.f32 %v2998, %v3208
    %v3210 = vpop.f32.mrb[0].mxu0
    %3211 = vmatprep.mubr.f32.mxu0 0.0
    %3212 = vmatmul.mubr.f32.gmra.mrb[0].mxu0 %v3032
    %v3213 = vpop.f32.mrb[0].mxu0
    %v3214 = vadd.f32 %v2998, %v3213
    %v3215 = vpop.f32.mrb[0].mxu0
    %3216 = vmatprep.mubr.f32.mxu0 0.0
    %3217 = vmatmul.mubr.f32.gmra.mrb[0].mxu0 %v3035
    %v3218 = vpop.f32.mrb[0].mxu0
    %v3219 = vadd.f32 %v2998, %v3218
    %v3220 = vpop.f32.mrb[0].mxu0
    %3221 = vmatprep.mubr.f32.mxu0 0.0
    %3222 = vmatmul.mubr.f32.gmra.mrb[0].mxu0 %v3038
    %v3223 = vpop.f32.mrb[0].mxu0
    %v3224 = vadd.f32 %v2998, %v3223
    %v3225 = vpop.f32.mrb[0].mxu0
    %3226 = vmatprep.mubr.f32.mxu0 0.0
    %3227 = vmatmul.mubr.f32.gmra.mrb[0].mxu0 %v3041
    %v3228 = vpop.f32.mrb[0].mxu0
    %v3229 = vadd.f32 %v2998, %v3228
    %v3230 = vpop.f32.mrb[0].mxu0
    %3231 = vmatprep.mubr.f32.mxu0 0.0
    %3232 = vmatmul.mubr.f32.gmra.mrb[0].mxu0 %v3044
    %v3233 = vpop.f32.mrb[0].mxu0
    %v3234 = vadd.f32 %v2998, %v3233
    %v3235 = vpop.f32.mrb[0].mxu0
    %3236 = vmatprep.mubr.f32.mxu0 0.0
    %3237 = vmatmul.mubr.f32.gmra.mrb[0].mxu0 %v3047
    %v3238 = vpop.f32.mrb[0].mxu0
    %v3239 = vadd.f32 %v2998, %v3238
    %v3240 = vpop.f32.mrb[0].mxu0
    %3241 = vmatprep.mubr.f32.mxu0 0.0
    %3242 = vmatmul.mubr.f32.gmra.mrb[0].mxu0 %v3050
    %v3243 = vpop.f32.mrb[0].mxu0
    %v3244 = vadd.f32 %v2998, %v3243
    %v3245 = vpop.f32.mrb[0].mxu0
    %3246 = vmatprep.mubr.f32.mxu0 0.0
    %3247 = vmatmul.mubr.f32.gmra.mrb[0].mxu0 %v3053
    %v3248 = vpop.f32.mrb[0].mxu0
    %v3249 = vadd.f32 %v2998, %v3248
    %v3250 = vpop.f32.mrb[0].mxu0
    %3251 = vmatprep.mubr.f32.mxu0 0.0
    %3252 = vmatmul.mubr.f32.gmra.mrb[0].mxu0 %v3056
    %v3253 = vpop.f32.mrb[0].mxu0
    %v3254 = vadd.f32 %v2998, %v3253
    %v3255 = vpop.f32.mrb[0].mxu0
    %3256 = vmatprep.mubr.f32.mxu0 0.0
    %3257 = vmatmul.mubr.f32.gmra.mrb[0].mxu0 %v3059
    %v3258 = vpop.f32.mrb[0].mxu0
    %v3259 = vadd.f32 %v2998, %v3258
    %v3260 = vpop.f32.mrb[0].mxu0
    %3261 = vmatprep.mubr.f32.mxu0 0.0
    %3262 = vmatmul.mubr.f32.gmra.mrb[0].mxu0 %v3062
    %v3263 = vpop.f32.mrb[0].mxu0
    %v3264 = vadd.f32 %v2998, %v3263
    %v3265 = vpop.f32.mrb[0].mxu0
    %3266 = vmatprep.mubr.f32.mxu0 0.0
    %3267 = vmatmul.mubr.f32.gmra.mrb[0].mxu0 %v3065
    %v3268 = vpop.f32.mrb[0].mxu0
    %v3269 = vadd.f32 %v2998, %v3268
    %v3270 = vpop.f32.mrb[0].mxu0
    %3271 = vmatprep.mubr.f32.mxu0 0.0
    %3272 = vmatmul.mubr.f32.gmra.mrb[0].mxu0 %v3068
    %v3273 = vpop.f32.mrb[0].mxu0
    %v3274 = vadd.f32 %v2998, %v3273
    %v3275 = vpop.f32.mrb[0].mxu0
    %3276 = vmatprep.mubr.f32.mxu0 0.0
    %3277 = vmatmul.mubr.f32.gmra.mrb[0].mxu0 %v3071
    %v3278 = vpop.f32.mrb[0].mxu0
    %v3279 = vadd.f32 %v2998, %v3278
    %v3280 = vpop.f32.mrb[0].mxu0
    %3281 = vmatprep.mubr.f32.mxu0 0.0
    %3282 = vmatmul.mubr.f32.gmra.mrb[0].mxu0 %v3074
    %v3283 = vpop.f32.mrb[0].mxu0
    %v3284 = vadd.f32 %v2998, %v3283
    %v3285 = vpop.f32.mrb[0].mxu0
    %3286 = vmatprep.mubr.f32.mxu0 0.0
    %3287 = vmatmul.mubr.f32.gmra.mrb[0].mxu0 %v3077
    %v3288 = vpop.f32.mrb[0].mxu0
    %v3289 = vadd.f32 %v2998, %v3288
    %v3290 = vpop.f32.mrb[0].mxu0
    %3291 = vmatprep.mubr.f32.mxu0 0.0
    %3292 = vmatmul.mubr.f32.gmra.mrb[0].mxu0 %v3080
    %v3293 = vpop.f32.mrb[0].mxu0
    %v3294 = vadd.f32 %v2998, %v3293
    %v3295 = vpop.f32.mrb[0].mxu0
    %3296 = vmatprep.mubr.f32.mxu0 0.0
    %3297 = vmatmul.mubr.f32.gmra.mrb[0].mxu0 %v3083
    %v3298 = vpop.f32.mrb[0].mxu0
    %v3299 = vadd.f32 %v2998, %v3298
    %v3300 = vpop.f32.mrb[0].mxu0
    %3301 = vmatprep.mubr.f32.mxu0 0.0
    %3302 = vmatmul.mubr.f32.gmra.mrb[0].mxu0 %v3086
    %v3303 = vpop.f32.mrb[0].mxu0
    %v3304 = vadd.f32 %v2998, %v3303
    %v3305 = vpop.f32.mrb[0].mxu0
    %3306 = vmatprep.mubr.f32.mxu0 0.0
    %3307 = vmatmul.mubr.f32.gmra.mrb[0].mxu0 %v3089
    %v3308 = vpop.f32.mrb[0].mxu0
    %v3309 = vadd.f32 %v2998, %v3308
    %v3310 = vpop.f32.mrb[0].mxu0
    %3311 = vmatprep.mubr.f32.mxu0 0.0
    %3312 = vmatmul.mubr.f32.gmra.mrb[0].mxu0 %v3092
    %v3313 = vpop.f32.mrb[0].mxu0
    %v3314 = vadd.f32 %v2998, %v3313
    %v3315 = vpop.f32.mrb[0].mxu0
    %3316 = vmatprep.mubr.f32.mxu0 0.0
    %3317 = vmatmul.mubr.f32.gmra.mrb[0].mxu0 %v3095
    %v3318 = vpop.f32.mrb[0].mxu0
    %v3319 = vadd.f32 %v2998, %v3318
    %v3320 = vpop.f32.mrb[0].mxu0
    %3321 = vdwg.mxu0
    %v3322 = vsel %vm77, %v3164, %v32
    %v3323 = vsel %vm77, %v3169, %v33
    %v3324 = vsel %vm77, %v3174, %v34
    %v3325 = vsel %vm77, %v3179, %v35
    %v3326 = vsel %vm77, %v3184, %v36
    %v3327 = vsel %vm77, %v3189, %v37
    %v3328 = vsel %vm77, %v3194, %v38
    %v3329 = vsel %vm77, %v3199, %v39
    %v3330 = vsel %vm77, %v3204, %v40
    %v3331 = vsel %vm77, %v3209, %v41
    %v3332 = vsel %vm77, %v3214, %v42
    %v3333 = vsel %vm77, %v3219, %v43
    %v3334 = vsel %vm77, %v3224, %v44
    %v3335 = vsel %vm77, %v3229, %v45
    %v3336 = vsel %vm77, %v3234, %v46
    %v3337 = vsel %vm77, %v3239, %v47
    %v3338 = vsel %vm77, %v3244, %v48
    %v3339 = vsel %vm77, %v3249, %v49
    %v3340 = vsel %vm77, %v3254, %v50
    %v3341 = vsel %vm77, %v3259, %v51
    %v3342 = vsel %vm77, %v3264, %v52
    %v3343 = vsel %vm77, %v3269, %v53
    %v3344 = vsel %vm77, %v3274, %v54
    %v3345 = vsel %vm77, %v3279, %v55
    %v3346 = vsel %vm77, %v3284, %v56
    %v3347 = vsel %vm77, %v3289, %v57
    %v3348 = vsel %vm77, %v3294, %v58
    %v3349 = vsel %vm77, %v3299, %v59
    %v3350 = vsel %vm77, %v3304, %v60
    %v3351 = vsel %vm77, %v3309, %v61
    %v3352 = vsel %vm77, %v3314, %v62
    %v3353 = vsel %vm77, %v3319, %v63
    %vm3354 = vcmask 326656
    %3355 = vst.msk [vmem:[#allocation5] sm:$0xff] %vm3354, %v3322
    %3356 = vst.msk [vmem:[#allocation5 + $0x8] sm:$0xff] %vm3354, %v3323
    %3357 = vst.msk [vmem:[#allocation5 + $0x10] sm:$0xff] %vm3354, %v3324
    %3358 = vst.msk [vmem:[#allocation5 + $0x18] sm:$0xff] %vm3354, %v3325
    %3359 = vst.msk [vmem:[#allocation5 + $0x20] sm:$0xff] %vm3354, %v3326
    %3360 = vst.msk [vmem:[#allocation5 + $0x28] sm:$0xff] %vm3354, %v3327
    %3361 = vst.msk [vmem:[#allocation5 + $0x30] sm:$0xff] %vm3354, %v3328
    %3362 = vst.msk [vmem:[#allocation5 + $0x38] sm:$0xff] %vm3354, %v3329
    %3363 = vst.msk [vmem:[#allocation5 + $0x40] sm:$0xff] %vm3354, %v3330
    %3364 = vst.msk [vmem:[#allocation5 + $0x48] sm:$0xff] %vm3354, %v3331
    %3365 = vst.msk [vmem:[#allocation5 + $0x50] sm:$0xff] %vm3354, %v3332
    %3366 = vst.msk [vmem:[#allocation5 + $0x58] sm:$0xff] %vm3354, %v3333
    %3367 = vst.msk [vmem:[#allocation5 + $0x60] sm:$0xff] %vm3354, %v3334
    %3368 = vst.msk [vmem:[#allocation5 + $0x68] sm:$0xff] %vm3354, %v3335
    %3369 = vst.msk [vmem:[#allocation5 + $0x70] sm:$0xff] %vm3354, %v3336
    %3370 = vst.msk [vmem:[#allocation5 + $0x78] sm:$0xff] %vm3354, %v3337
    %3371 = vst.msk [vmem:[#allocation5 + $0x80] sm:$0xff] %vm3354, %v3338
    %3372 = vst.msk [vmem:[#allocation5 + $0x88] sm:$0xff] %vm3354, %v3339
    %3373 = vst.msk [vmem:[#allocation5 + $0x90] sm:$0xff] %vm3354, %v3340
    %3374 = vst.msk [vmem:[#allocation5 + $0x98] sm:$0xff] %vm3354, %v3341
    %3375 = vst.msk [vmem:[#allocation5 + $0xa0] sm:$0xff] %vm3354, %v3342
    %3376 = vst.msk [vmem:[#allocation5 + $0xa8] sm:$0xff] %vm3354, %v3343
    %3377 = vst.msk [vmem:[#allocation5 + $0xb0] sm:$0xff] %vm3354, %v3344
    %3378 = vst.msk [vmem:[#allocation5 + $0xb8] sm:$0xff] %vm3354, %v3345
    %3379 = vst.msk [vmem:[#allocation5 + $0xc0] sm:$0xff] %vm3354, %v3346
    %3380 = vst.msk [vmem:[#allocation5 + $0xc8] sm:$0xff] %vm3354, %v3347
    %3381 = vst.msk [vmem:[#allocation5 + $0xd0] sm:$0xff] %vm3354, %v3348
    %3382 = vst.msk [vmem:[#allocation5 + $0xd8] sm:$0xff] %vm3354, %v3349
    %3383 = vst.msk [vmem:[#allocation5 + $0xe0] sm:$0xff] %vm3354, %v3350
    %3384 = vst.msk [vmem:[#allocation5 + $0xe8] sm:$0xff] %vm3354, %v3351
    %3385 = vst.msk [vmem:[#allocation5 + $0xf0] sm:$0xff] %vm3354, %v3352
    %3386 = vst.msk [vmem:[#allocation5 + $0xf8] sm:$0xff] %vm3354, %v3353
    // Predicated region
    $region22: #{tpu_custom_call.1} parent=1 // pred_check
      _
    $region23: #{tpu_custom_call.1} parent=1 // pred_check_branch
      %3388 = sbr.rel (0) target = $region25
    $region24: #{tpu_custom_call.1} parent=1 // pred_region
      %s3390 = ssub.s32 4096, 4096
      %3391 = vsyncadd [#allocation4], %s3390
      %s3392 = sshll.u32 [#allocation5], 4
      %s3393 = int_to_ptr.vmem [resolvable:$true] %s3392
      %3398 = dma.vmem_to_hbm [thread:$0]  %s3393, 4096, %s4, [#allocation4], 128, 128, 8
    $region25: #{tpu_custom_call.1} parent=1 // pred_fallthru
      _
    // Predicated region
    $region26: #{tpu_custom_call.1} parent=1 // pred_check
      _
    $region27: #{tpu_custom_call.1} parent=1 // pred_check_branch
      %3400 = sbr.rel (0) target = $region29
    $region28: #{tpu_custom_call.1} parent=1 // pred_region
      %3401 = dma.done [#allocation4], 4096
    $region29: #{tpu_custom_call.1} parent=1 // pred_fallthru
      _
    %3402 = vsyncpa [#allocation3], 1
    %3403 = vsyncpa [#allocation4], 1

</llo_original>
